<compile_context>
chip_gen: v5e
topology: v5e:2x2
jax: 0.10.0
libtpu: 0.0.40
codegen_flags: <defaults>
</compile_context>

<pallas_src>
import functools

import numpy as np
import jax
import jax.numpy as jnp
from jax import lax
from jax.experimental import pallas as pl
from jax.experimental.pallas import tpu as pltpu

_MASK_VALUE = -1e30  # finite "-inf": exp underflows to 0, no NaN for fully-masked rows


# ----------------------------- kernel helpers ------------------------------

def _layer_norm(x, gamma, beta, eps=1e-5):
    # PyTorch nn.LayerNorm: biased variance over the last dim.
    mu = jnp.mean(x, axis=-1, keepdims=True)
    xc = x - mu
    var = jnp.mean(xc * xc, axis=-1, keepdims=True)
    return xc * lax.rsqrt(var + eps) * gamma + beta


def _transformer_layer_kernel(x_ref, wqkv_ref, bqkv_ref, wot_ref, bo_ref, perm_ref,
                              g1_ref, be1_ref, w1t_ref, b1_ref, w2t_ref, b2_ref,
                              g2_ref, be2_ref, y_ref, *, num_heads, seq_len, mxu_dtype):
    """Full TransformerLayer forward for a block of sequences, entirely in VMEM.

    x_ref/y_ref are (bblk*n, d): bblk sequences stacked along the sublane axis so every dense
    matmul sees more rows per MXU push and the grid-step overhead is amortized.
    """
    x = x_ref[...]                         # (rows, d) f32
    rows, d = x.shape
    n = seq_len
    bb = rows // n                         # sequences in this block (static)
    hd = d // num_heads
    segs = d // n                          # head-output rows packed per output row (view_as)

    def mm(a, w):
        # Weights are already stored in mxu_dtype (cast once in prepare_params);
        # only the activation is cast here.  f32 accumulation on the MXU.
        return jnp.dot(a.astype(mxu_dtype), w, preferred_element_type=jnp.float32)

    # ---- fused QKV projection: one MXU push for all three projections, all sequences ----
    qkv = mm(x, wqkv_ref[...]) + bqkv_ref[...]           # (rows, 3d)
    q = qkv[:, 0 * d:1 * d]
    k = qkv[:, 1 * d:2 * d]
    v = qkv[:, 2 * d:3 * d]

    diag = (lax.broadcasted_iota(jnp.int32, (n, n), 0)
            == lax.broadcasted_iota(jnp.int32, (n, n), 1))

    # ---- per-sequence, per-head masked softmax attention ----
    # Each head output is produced already transposed ((hd, n)) by the dot_general, so the
    # transpose rides the MXU; heads/sequences are stacked with single concats (no per-row
    # sub-vreg strip slicing).
    seq_cols = []
    for b in range(bb):                    # static python loops: bb, num_heads are tiny
        rs = slice(b * n, (b + 1) * n)
        qb, kb, vb = q[rs, :], k[rs, :], v[rs, :]
        heads = []
        for a in range(num_heads):
            cs = slice(a * hd, (a + 1) * hd)
            qa = qb[:, cs].astype(mxu_dtype)
            ka = kb[:, cs].astype(mxu_dtype)
            va = vb[:, cs].astype(mxu_dtype)
            att = lax.dot_general(qa, ka, (((1,), (1,)), ((), ())),
                                  preferred_element_type=jnp.float32)       # (n, n) = q @ k^T
            if n > 1:
                att = jnp.where(diag, _MASK_VALUE, att)   # masked_fill(eye(N)==1, -inf)
            m = jnp.max(att, axis=-1, keepdims=True)
            e = jnp.exp(att - m)
            # approx reciprocal: EUP slot, tiny systematic deviation vs exact softmax (reviewed).
            p = e * pl.reciprocal(jnp.sum(e, axis=-1, keepdims=True), approx=True)
            # oat[hh, i] = (p @ va)[i, hh] — head output produced already transposed.
            heads.append(lax.dot_general(va, p.astype(mxu_dtype), (((0,), (1,)), ((), ())),
                                         preferred_element_type=jnp.float32))  # (hd, n)
        seq_cols.append(heads[0] if num_heads == 1 else jnp.concatenate(heads, axis=0))
    oat = seq_cols[0] if bb == 1 else jnp.concatenate(seq_cols, axis=1)     # (d, bb*n)

    # ---- torch's Oh.transpose(1,2).contiguous().view_as(X) ----
    # Per sequence this is the row-major reshape (d, n) -> (n, d).  A constant permutation
    # matmul (idle-MXU data movement, same cost order as one QKV projection) reorders the rows
    # so the reshape becomes: contiguous (n, n) row blocks concatenated along the lane axis.
    t = jnp.dot(perm_ref[...], oat.astype(mxu_dtype),
                preferred_element_type=jnp.float32)                          # (d, bb*n)
    o_rows = []
    for b in range(bb):
        tb = t[:, b * n:(b + 1) * n]
        if segs == 1:
            o_rows.append(tb)
        else:
            o_rows.append(jnp.concatenate([tb[s * n:(s + 1) * n, :] for s in range(segs)],
                                          axis=1))                          # (n, d)
    o = o_rows[0] if bb == 1 else jnp.concatenate(o_rows, axis=0)            # (rows, d)

    # ---- Wo + residual + LN, FFN + residual + LN; one lane-dense full-block store ----
    attn = mm(o, wot_ref[...]) + bo_ref[...]
    z = _layer_norm(x + attn, g1_ref[...], be1_ref[...])
    hid = jnp.maximum(mm(z, w1t_ref[...]) + b1_ref[...], 0.0)
    ff = mm(hid, w2t_ref[...]) + b2_ref[...]
    y_ref[...] = _layer_norm(z + ff, g2_ref[...], be2_ref[...])


# ------------------------------- wrapper ------------------------------------

def prepare_params(p, mxu_dtype=jnp.float32):
    """One-time packing: pre-transpose, fuse QKV, and cast matmul weights to mxu_dtype.

    Biases / LayerNorm params stay f32 (added after f32 accumulation)."""
    r = lambda v: v.reshape(1, -1).astype(jnp.float32)
    w = lambda v: v.astype(mxu_dtype)
    w_qkv_t = jnp.concatenate([p['Wq'].T, p['Wk'].T, p['Wv'].T], axis=1)     # (d, 3d)
    b_qkv = jnp.concatenate([p['bq'], p['bk'], p['bv']]).reshape(1, -1)      # (1, 3d)
    return (w(w_qkv_t), b_qkv.astype(jnp.float32),
            w(p['Wo'].T), r(p['bo']), r(p['g1']), r(p['beta1']),
            w(p['W1'].T), r(p['b1']), w(p['W2'].T), r(p['b2']), r(p['g2']), r(p['beta2']))


def _head_perm(n, d, dtype):
    """(d, d) permutation P with P[s*n + r, r*(d//n) + s] = 1.

    P @ oat reorders the stacked, transposed head outputs so that torch's
    transpose(1,2).view_as(X) recombination becomes contiguous row blocks."""
    segs = d // n
    perm = np.zeros((d, d), dtype=np.float32)
    r = np.arange(n)
    for s in range(segs):
        perm[s * n + r, r * segs + s] = 1.0
    return jnp.asarray(perm, dtype=dtype)


def transformer_layer(x, prep, num_heads, mxu_dtype=jnp.float32, seqs_per_block=2):
    """x: (n, d) or (batch, n, d). prep: tuple from prepare_params(params, mxu_dtype)."""
    squeeze = x.ndim == 2
    if squeeze:
        x = x[None]
    b, n, d = x.shape
    assert d % num_heads == 0
    # constraint of the in-kernel view_as recombination (holds for the demo sizes)
    assert d % n == 0, "d_model must be a multiple of seq_len for this layout"

    # Pack several sequences per grid step; keep the parallel axis even when possible (v7x: 2 TCs).
    bblk = seqs_per_block if (seqs_per_block > 0 and b % seqs_per_block == 0) else 1
    bblk = min(bblk, b)
    grid = (b // bblk,)
    rows_blk = bblk * n

    perm = _head_perm(n, d, mxu_dtype)
    ops = prep[:4] + (perm,) + prep[4:]

    # Free row-major flatten outside the kernel -> the kernel sees a plain (rows, d) 2-D block.
    xf = x.reshape(b * n, d)

    x_spec = pl.BlockSpec((rows_blk, d), lambda i: (i, 0))
    # Constant-index (resident) operands: single-buffer them — default double buffering would
    # just double their VMEM footprint since the block index never changes across the grid.
    w_spec = lambda a: pl.BlockSpec(a.shape, lambda i: (0, 0), pipeline_mode=pl.Buffered(1))

    # VMEM budget: raise the scoped limit only when the resident working set needs it,
    # with per-generation headroom (v7x has 64 MiB physical vs 128 MiB on v5e/v6e).
    d_ffn = prep[6].shape[1]
    weight_bytes = sum(int(np.prod(a.shape)) * a.dtype.itemsize for a in ops)
    act_bytes = 4 * rows_blk * (12 * d + 2 * d_ffn)          # rough f32 activation working set
    est = weight_bytes + 2 * 2 * rows_blk * d * 4 + act_bytes
    cp_kwargs = dict(dimension_semantics=("parallel",))
    if est > 12 * 1024 * 1024:
        try:
            phys = pltpu.get_tpu_info().vmem_capacity_bytes
        except Exception:
            phys = 64 * 1024 * 1024
        cp_kwargs["vmem_limit_bytes"] = int(min(est * 2, int(phys * 0.75)))

    y = pl.pallas_call(
        functools.partial(_transformer_layer_kernel, num_heads=num_heads,
                          seq_len=n, mxu_dtype=mxu_dtype),
        out_shape=jax.ShapeDtypeStruct((b * n, d), jnp.float32),
        grid=grid,
        in_specs=[x_spec] + [w_spec(a) for a in ops],
        out_specs=pl.BlockSpec((rows_blk, d), lambda i: (i, 0)),
        compiler_params=pltpu.CompilerParams(**cp_kwargs),
    )(xf, *ops)
    y = y.reshape(b, n, d)
    return y[0] if squeeze else y


# --------------------------- params & reference ------------------------------

def init_params(key, d_model, d_ffn):
    def linear(k, fan_in, fan_out):  # deterministic, PyTorch-style uniform init
        kw, kb = jax.random.split(k)
        bound = 1.0 / float(np.sqrt(fan_in))
        w = jax.random.uniform(kw, (fan_out, fan_in), jnp.float32, -bound, bound)
        b = jax.random.uniform(kb, (fan_out,), jnp.float32, -bound, bound)
        return w, b

    ks = jax.random.split(key, 6)
    p = {}
    p['Wq'], p['bq'] = linear(ks[0], d_model, d_model)
    p['Wk'], p['bk'] = linear(ks[1], d_model, d_model)
    p['Wv'], p['bv'] = linear(ks[2], d_model, d_model)
    p['Wo'], p['bo'] = linear(ks[3], d_model, d_model)
    p['W1'], p['b1'] = linear(ks[4], d_model, d_ffn)
    p['W2'], p['b2'] = linear(ks[5], d_ffn, d_model)
    p['g1'] = jnp.ones((d_model,), jnp.float32)
    p['beta1'] = jnp.zeros((d_model,), jnp.float32)
    p['g2'] = jnp.ones((d_model,), jnp.float32)
    p['beta2'] = jnp.zeros((d_model,), jnp.float32)
    return p


def reference_forward(x, p, num_heads, eps=1e-5):
    """Pure-JAX transcription of the PyTorch module (eval mode), single (N, d) input."""
    n, d = x.shape
    hd = d // num_heads
    lin = lambda a, w, b: a @ w.T + b

    def ln(a, g, b):
        mu = a.mean(-1, keepdims=True)
        var = ((a - mu) ** 2).mean(-1, keepdims=True)
        return (a - mu) / jnp.sqrt(var + eps) * g + b

    q = lin(x, p['Wq'], p['bq']).reshape(n, num_heads, hd).transpose(1, 0, 2)
    k = lin(x, p['Wk'], p['bk']).reshape(n, num_heads, hd).transpose(1, 0, 2)
    v = lin(x, p['Wv'], p['bv']).reshape(n, num_heads, hd).transpose(1, 0, 2)
    att = jnp.einsum('hnd,hmd->hnm', q, k)
    if n > 1:
        att = jnp.where(jnp.eye(n, dtype=bool), -jnp.inf, att)
    pa = jax.nn.softmax(att, axis=-1)
    oh = jnp.einsum('hnm,hmd->hnd', pa, v)
    o = oh.transpose(0, 2, 1).reshape(n, d)   # matches torch transpose(1,2).view_as(X)
    z = ln(x + lin(o, p['Wo'], p['bo']), p['g1'], p['beta1'])
    ff = lin(jax.nn.relu(lin(z, p['W1'], p['b1'])), p['W2'], p['b2'])
    return ln(z + ff, p['g2'], p['beta2'])


# --------------------------------- main --------------------------------------

if __name__ == "__main__":
    B, N, H_HEADS, D_MODEL, D_FFN = 4, 8, 4, 32, 64
    key = jax.random.PRNGKey(0)
    kx, kp = jax.random.split(key)
    x = jax.random.normal(kx, (B, N, D_MODEL), jnp.float32)
    params = init_params(kp, D_MODEL, D_FFN)

    # f32 MXU operands at this toy size so numerics match the reference exactly;
    # pass mxu_dtype=jnp.bfloat16 here (and to transformer_layer) at realistic d_model/d_ffn.
    prep = prepare_params(params)            # weights packed/transposed/cast ONCE

    y = transformer_layer(x, prep, H_HEADS, seqs_per_block=2)
    y = jax.block_until_ready(y)

    y_ref = jax.vmap(lambda xb: reference_forward(xb, params, H_HEADS))(x)
    assert y.shape == (B, N, D_MODEL)
    np.testing.assert_allclose(np.asarray(y), np.asarray(y_ref), rtol=2e-2, atol=2e-2)
    print("KERNEL_OK")
</pallas_src>

<mosaic_0001>
module attributes {stable_mosaic.version = 11 : i64} {
  func.func @_transformer_layer_kernel(%arg0: i32, %arg1: memref<16x32xf32, #tpu.memory_space<vmem>>, %arg2: memref<32x96xf32, #tpu.memory_space<vmem>>, %arg3: memref<1x96xf32, #tpu.memory_space<vmem>>, %arg4: memref<32x32xf32, #tpu.memory_space<vmem>>, %arg5: memref<1x32xf32, #tpu.memory_space<vmem>>, %arg6: memref<32x32xf32, #tpu.memory_space<vmem>>, %arg7: memref<1x32xf32, #tpu.memory_space<vmem>>, %arg8: memref<1x32xf32, #tpu.memory_space<vmem>>, %arg9: memref<32x64xf32, #tpu.memory_space<vmem>>, %arg10: memref<1x64xf32, #tpu.memory_space<vmem>>, %arg11: memref<64x32xf32, #tpu.memory_space<vmem>>, %arg12: memref<1x32xf32, #tpu.memory_space<vmem>>, %arg13: memref<1x32xf32, #tpu.memory_space<vmem>>, %arg14: memref<1x32xf32, #tpu.memory_space<vmem>>, %arg15: memref<16x32xf32, #tpu.memory_space<vmem>>) attributes {dimension_semantics = [#tpu.dimension_semantics<parallel>], iteration_bounds = array<i64: 2>, scalar_prefetch = 0 : i64, scratch_operands = 0 : i64, tpu.core_type = #tpu.core_type<tc>, window_params = [{transform_indices = @transform_0, window_bounds = array<i64: 16, 32>}, {pipeline_mode = #tpu.pipeline_mode<synchronous>, transform_indices = @transform_1, window_bounds = array<i64: 32, 96>}, {pipeline_mode = #tpu.pipeline_mode<synchronous>, transform_indices = @transform_2, window_bounds = array<i64: 1, 96>}, {pipeline_mode = #tpu.pipeline_mode<synchronous>, transform_indices = @transform_3, window_bounds = array<i64: 32, 32>}, {pipeline_mode = #tpu.pipeline_mode<synchronous>, transform_indices = @transform_4, window_bounds = array<i64: 1, 32>}, {pipeline_mode = #tpu.pipeline_mode<synchronous>, transform_indices = @transform_5, window_bounds = array<i64: 32, 32>}, {pipeline_mode = #tpu.pipeline_mode<synchronous>, transform_indices = @transform_6, window_bounds = array<i64: 1, 32>}, {pipeline_mode = #tpu.pipeline_mode<synchronous>, transform_indices = @transform_7, window_bounds = array<i64: 1, 32>}, {pipeline_mode = #tpu.pipeline_mode<synchronous>, transform_indices = @transform_8, window_bounds = array<i64: 32, 64>}, {pipeline_mode = #tpu.pipeline_mode<synchronous>, transform_indices = @transform_9, window_bounds = array<i64: 1, 64>}, {pipeline_mode = #tpu.pipeline_mode<synchronous>, transform_indices = @transform_10, window_bounds = array<i64: 64, 32>}, {pipeline_mode = #tpu.pipeline_mode<synchronous>, transform_indices = @transform_11, window_bounds = array<i64: 1, 32>}, {pipeline_mode = #tpu.pipeline_mode<synchronous>, transform_indices = @transform_12, window_bounds = array<i64: 1, 32>}, {pipeline_mode = #tpu.pipeline_mode<synchronous>, transform_indices = @transform_13, window_bounds = array<i64: 1, 32>}, {transform_indices = @transform_14, window_bounds = array<i64: 16, 32>}]} {
    %c0 = arith.constant 0 : index
    %c0_0 = arith.constant 0 : index
    %0 = vector.load %arg1[%c0, %c0_0] : memref<16x32xf32, #tpu.memory_space<vmem>>, vector<16x32xf32>
    %c0_1 = arith.constant 0 : index
    %c0_2 = arith.constant 0 : index
    %1 = vector.load %arg2[%c0_1, %c0_2] : memref<32x96xf32, #tpu.memory_space<vmem>>, vector<32x96xf32>
    %cst = arith.constant dense<0.000000e+00> : vector<16x96xf32>
    %2 = tpu.matmul %0, %1, %cst {dimension_numbers = #tpu.dot_dimension_numbers<[1], [0], [0], [1], [0, 0, 1, 1], [], []>} : vector<16x32xf32>, vector<32x96xf32>, vector<16x96xf32> -> vector<16x96xf32>
    %c0_3 = arith.constant 0 : index
    %c0_4 = arith.constant 0 : index
    %3 = vector.load %arg3[%c0_3, %c0_4] : memref<1x96xf32, #tpu.memory_space<vmem>>, vector<1x96xf32>
    %4 = vector.broadcast %3 : vector<1x96xf32> to vector<16x96xf32>
    %5 = arith.addf %2, %4 : vector<16x96xf32>
    %6 = vector.extract_strided_slice %5 {offsets = [0, 0], sizes = [16, 32], strides = [1, 1]} : vector<16x96xf32> to vector<16x32xf32>
    %7 = vector.extract_strided_slice %5 {offsets = [0, 32], sizes = [16, 32], strides = [1, 1]} : vector<16x96xf32> to vector<16x32xf32>
    %8 = vector.extract_strided_slice %5 {offsets = [0, 64], sizes = [16, 32], strides = [1, 1]} : vector<16x96xf32> to vector<16x32xf32>
    %9 = tpu.iota {dimensions = array<i32: 0>} : vector<8x8xi32>
    %10 = tpu.iota {dimensions = array<i32: 1>} : vector<8x8xi32>
    %11 = arith.cmpi eq, %9, %10 : vector<8x8xi32>
    %12 = vector.extract_strided_slice %6 {offsets = [0, 0], sizes = [8, 32], strides = [1, 1]} : vector<16x32xf32> to vector<8x32xf32>
    %13 = vector.extract_strided_slice %7 {offsets = [0, 0], sizes = [8, 32], strides = [1, 1]} : vector<16x32xf32> to vector<8x32xf32>
    %14 = vector.extract_strided_slice %8 {offsets = [0, 0], sizes = [8, 32], strides = [1, 1]} : vector<16x32xf32> to vector<8x32xf32>
    %15 = vector.extract_strided_slice %12 {offsets = [0, 0], sizes = [8, 8], strides = [1, 1]} : vector<8x32xf32> to vector<8x8xf32>
    %16 = vector.extract_strided_slice %13 {offsets = [0, 0], sizes = [8, 8], strides = [1, 1]} : vector<8x32xf32> to vector<8x8xf32>
    %17 = vector.extract_strided_slice %14 {offsets = [0, 0], sizes = [8, 8], strides = [1, 1]} : vector<8x32xf32> to vector<8x8xf32>
    %cst_5 = arith.constant dense<0.000000e+00> : vector<8x8xf32>
    %18 = tpu.matmul %15, %16, %cst_5 {dimension_numbers = #tpu.dot_dimension_numbers<[1], [1], [0], [0], [0, 0, 1, 0], [], []>} : vector<8x8xf32>, vector<8x8xf32>, vector<8x8xf32> -> vector<8x8xf32>
    %cst_6 = arith.constant -1.000000e+30 : f32
    %19 = vector.broadcast %cst_6 : f32 to vector<8x8xf32>
    %20 = arith.select %11, %19, %18 : vector<8x8xi1>, vector<8x8xf32>
    %cst_7 = arith.constant dense<0xFF800000> : vector<8xf32>
    %21 = vector.multi_reduction <maximumf>, %20, %cst_7 [1] : vector<8x8xf32> to vector<8xf32>
    %22 = vector.shape_cast %21 : vector<8xf32> to vector<8x1xf32>
    %23 = vector.broadcast %22 : vector<8x1xf32> to vector<8x8xf32>
    %24 = arith.subf %20, %23 : vector<8x8xf32>
    %25 = math.exp %24 : vector<8x8xf32>
    %cst_8 = arith.constant dense<0.000000e+00> : vector<8xf32>
    %26 = vector.multi_reduction <add>, %25, %cst_8 [1] : vector<8x8xf32> to vector<8xf32>
    %27 = vector.shape_cast %26 : vector<8xf32> to vector<8x1xf32>
    %28 = tpu.reciprocal %27 {approx = true} : vector<8x1xf32> -> vector<8x1xf32>
    %29 = vector.broadcast %28 : vector<8x1xf32> to vector<8x8xf32>
    %30 = arith.mulf %25, %29 : vector<8x8xf32>
    %cst_9 = arith.constant dense<0.000000e+00> : vector<8x8xf32>
    %31 = tpu.matmul %17, %30, %cst_9 {dimension_numbers = #tpu.dot_dimension_numbers<[0], [1], [1], [0], [0, 1, 1, 0], [], []>} : vector<8x8xf32>, vector<8x8xf32>, vector<8x8xf32> -> vector<8x8xf32>
    %32 = vector.extract_strided_slice %12 {offsets = [0, 8], sizes = [8, 8], strides = [1, 1]} : vector<8x32xf32> to vector<8x8xf32>
    %33 = vector.extract_strided_slice %13 {offsets = [0, 8], sizes = [8, 8], strides = [1, 1]} : vector<8x32xf32> to vector<8x8xf32>
    %34 = vector.extract_strided_slice %14 {offsets = [0, 8], sizes = [8, 8], strides = [1, 1]} : vector<8x32xf32> to vector<8x8xf32>
    %cst_10 = arith.constant dense<0.000000e+00> : vector<8x8xf32>
    %35 = tpu.matmul %32, %33, %cst_10 {dimension_numbers = #tpu.dot_dimension_numbers<[1], [1], [0], [0], [0, 0, 1, 0], [], []>} : vector<8x8xf32>, vector<8x8xf32>, vector<8x8xf32> -> vector<8x8xf32>
    %cst_11 = arith.constant -1.000000e+30 : f32
    %36 = vector.broadcast %cst_11 : f32 to vector<8x8xf32>
    %37 = arith.select %11, %36, %35 : vector<8x8xi1>, vector<8x8xf32>
    %cst_12 = arith.constant dense<0xFF800000> : vector<8xf32>
    %38 = vector.multi_reduction <maximumf>, %37, %cst_12 [1] : vector<8x8xf32> to vector<8xf32>
    %39 = vector.shape_cast %38 : vector<8xf32> to vector<8x1xf32>
    %40 = vector.broadcast %39 : vector<8x1xf32> to vector<8x8xf32>
    %41 = arith.subf %37, %40 : vector<8x8xf32>
    %42 = math.exp %41 : vector<8x8xf32>
    %cst_13 = arith.constant dense<0.000000e+00> : vector<8xf32>
    %43 = vector.multi_reduction <add>, %42, %cst_13 [1] : vector<8x8xf32> to vector<8xf32>
    %44 = vector.shape_cast %43 : vector<8xf32> to vector<8x1xf32>
    %45 = tpu.reciprocal %44 {approx = true} : vector<8x1xf32> -> vector<8x1xf32>
    %46 = vector.broadcast %45 : vector<8x1xf32> to vector<8x8xf32>
    %47 = arith.mulf %42, %46 : vector<8x8xf32>
    %cst_14 = arith.constant dense<0.000000e+00> : vector<8x8xf32>
    %48 = tpu.matmul %34, %47, %cst_14 {dimension_numbers = #tpu.dot_dimension_numbers<[0], [1], [1], [0], [0, 1, 1, 0], [], []>} : vector<8x8xf32>, vector<8x8xf32>, vector<8x8xf32> -> vector<8x8xf32>
    %49 = vector.extract_strided_slice %12 {offsets = [0, 16], sizes = [8, 8], strides = [1, 1]} : vector<8x32xf32> to vector<8x8xf32>
    %50 = vector.extract_strided_slice %13 {offsets = [0, 16], sizes = [8, 8], strides = [1, 1]} : vector<8x32xf32> to vector<8x8xf32>
    %51 = vector.extract_strided_slice %14 {offsets = [0, 16], sizes = [8, 8], strides = [1, 1]} : vector<8x32xf32> to vector<8x8xf32>
    %cst_15 = arith.constant dense<0.000000e+00> : vector<8x8xf32>
    %52 = tpu.matmul %49, %50, %cst_15 {dimension_numbers = #tpu.dot_dimension_numbers<[1], [1], [0], [0], [0, 0, 1, 0], [], []>} : vector<8x8xf32>, vector<8x8xf32>, vector<8x8xf32> -> vector<8x8xf32>
    %cst_16 = arith.constant -1.000000e+30 : f32
    %53 = vector.broadcast %cst_16 : f32 to vector<8x8xf32>
    %54 = arith.select %11, %53, %52 : vector<8x8xi1>, vector<8x8xf32>
    %cst_17 = arith.constant dense<0xFF800000> : vector<8xf32>
    %55 = vector.multi_reduction <maximumf>, %54, %cst_17 [1] : vector<8x8xf32> to vector<8xf32>
    %56 = vector.shape_cast %55 : vector<8xf32> to vector<8x1xf32>
    %57 = vector.broadcast %56 : vector<8x1xf32> to vector<8x8xf32>
    %58 = arith.subf %54, %57 : vector<8x8xf32>
    %59 = math.exp %58 : vector<8x8xf32>
    %cst_18 = arith.constant dense<0.000000e+00> : vector<8xf32>
    %60 = vector.multi_reduction <add>, %59, %cst_18 [1] : vector<8x8xf32> to vector<8xf32>
    %61 = vector.shape_cast %60 : vector<8xf32> to vector<8x1xf32>
    %62 = tpu.reciprocal %61 {approx = true} : vector<8x1xf32> -> vector<8x1xf32>
    %63 = vector.broadcast %62 : vector<8x1xf32> to vector<8x8xf32>
    %64 = arith.mulf %59, %63 : vector<8x8xf32>
    %cst_19 = arith.constant dense<0.000000e+00> : vector<8x8xf32>
    %65 = tpu.matmul %51, %64, %cst_19 {dimension_numbers = #tpu.dot_dimension_numbers<[0], [1], [1], [0], [0, 1, 1, 0], [], []>} : vector<8x8xf32>, vector<8x8xf32>, vector<8x8xf32> -> vector<8x8xf32>
    %66 = vector.extract_strided_slice %12 {offsets = [0, 24], sizes = [8, 8], strides = [1, 1]} : vector<8x32xf32> to vector<8x8xf32>
    %67 = vector.extract_strided_slice %13 {offsets = [0, 24], sizes = [8, 8], strides = [1, 1]} : vector<8x32xf32> to vector<8x8xf32>
    %68 = vector.extract_strided_slice %14 {offsets = [0, 24], sizes = [8, 8], strides = [1, 1]} : vector<8x32xf32> to vector<8x8xf32>
    %cst_20 = arith.constant dense<0.000000e+00> : vector<8x8xf32>
    %69 = tpu.matmul %66, %67, %cst_20 {dimension_numbers = #tpu.dot_dimension_numbers<[1], [1], [0], [0], [0, 0, 1, 0], [], []>} : vector<8x8xf32>, vector<8x8xf32>, vector<8x8xf32> -> vector<8x8xf32>
    %cst_21 = arith.constant -1.000000e+30 : f32
    %70 = vector.broadcast %cst_21 : f32 to vector<8x8xf32>
    %71 = arith.select %11, %70, %69 : vector<8x8xi1>, vector<8x8xf32>
    %cst_22 = arith.constant dense<0xFF800000> : vector<8xf32>
    %72 = vector.multi_reduction <maximumf>, %71, %cst_22 [1] : vector<8x8xf32> to vector<8xf32>
    %73 = vector.shape_cast %72 : vector<8xf32> to vector<8x1xf32>
    %74 = vector.broadcast %73 : vector<8x1xf32> to vector<8x8xf32>
    %75 = arith.subf %71, %74 : vector<8x8xf32>
    %76 = math.exp %75 : vector<8x8xf32>
    %cst_23 = arith.constant dense<0.000000e+00> : vector<8xf32>
    %77 = vector.multi_reduction <add>, %76, %cst_23 [1] : vector<8x8xf32> to vector<8xf32>
    %78 = vector.shape_cast %77 : vector<8xf32> to vector<8x1xf32>
    %79 = tpu.reciprocal %78 {approx = true} : vector<8x1xf32> -> vector<8x1xf32>
    %80 = vector.broadcast %79 : vector<8x1xf32> to vector<8x8xf32>
    %81 = arith.mulf %76, %80 : vector<8x8xf32>
    %cst_24 = arith.constant dense<0.000000e+00> : vector<8x8xf32>
    %82 = tpu.matmul %68, %81, %cst_24 {dimension_numbers = #tpu.dot_dimension_numbers<[0], [1], [1], [0], [0, 1, 1, 0], [], []>} : vector<8x8xf32>, vector<8x8xf32>, vector<8x8xf32> -> vector<8x8xf32>
    %83 = tpu.concatenate %31, %48, %65, %82 in 0 : vector<8x8xf32>, vector<8x8xf32>, vector<8x8xf32>, vector<8x8xf32> -> vector<32x8xf32>
    %84 = vector.extract_strided_slice %6 {offsets = [8, 0], sizes = [8, 32], strides = [1, 1]} : vector<16x32xf32> to vector<8x32xf32>
    %85 = vector.extract_strided_slice %7 {offsets = [8, 0], sizes = [8, 32], strides = [1, 1]} : vector<16x32xf32> to vector<8x32xf32>
    %86 = vector.extract_strided_slice %8 {offsets = [8, 0], sizes = [8, 32], strides = [1, 1]} : vector<16x32xf32> to vector<8x32xf32>
    %87 = vector.extract_strided_slice %84 {offsets = [0, 0], sizes = [8, 8], strides = [1, 1]} : vector<8x32xf32> to vector<8x8xf32>
    %88 = vector.extract_strided_slice %85 {offsets = [0, 0], sizes = [8, 8], strides = [1, 1]} : vector<8x32xf32> to vector<8x8xf32>
    %89 = vector.extract_strided_slice %86 {offsets = [0, 0], sizes = [8, 8], strides = [1, 1]} : vector<8x32xf32> to vector<8x8xf32>
    %cst_25 = arith.constant dense<0.000000e+00> : vector<8x8xf32>
    %90 = tpu.matmul %87, %88, %cst_25 {dimension_numbers = #tpu.dot_dimension_numbers<[1], [1], [0], [0], [0, 0, 1, 0], [], []>} : vector<8x8xf32>, vector<8x8xf32>, vector<8x8xf32> -> vector<8x8xf32>
    %cst_26 = arith.constant -1.000000e+30 : f32
    %91 = vector.broadcast %cst_26 : f32 to vector<8x8xf32>
    %92 = arith.select %11, %91, %90 : vector<8x8xi1>, vector<8x8xf32>
    %cst_27 = arith.constant dense<0xFF800000> : vector<8xf32>
    %93 = vector.multi_reduction <maximumf>, %92, %cst_27 [1] : vector<8x8xf32> to vector<8xf32>
    %94 = vector.shape_cast %93 : vector<8xf32> to vector<8x1xf32>
    %95 = vector.broadcast %94 : vector<8x1xf32> to vector<8x8xf32>
    %96 = arith.subf %92, %95 : vector<8x8xf32>
    %97 = math.exp %96 : vector<8x8xf32>
    %cst_28 = arith.constant dense<0.000000e+00> : vector<8xf32>
    %98 = vector.multi_reduction <add>, %97, %cst_28 [1] : vector<8x8xf32> to vector<8xf32>
    %99 = vector.shape_cast %98 : vector<8xf32> to vector<8x1xf32>
    %100 = tpu.reciprocal %99 {approx = true} : vector<8x1xf32> -> vector<8x1xf32>
    %101 = vector.broadcast %100 : vector<8x1xf32> to vector<8x8xf32>
    %102 = arith.mulf %97, %101 : vector<8x8xf32>
    %cst_29 = arith.constant dense<0.000000e+00> : vector<8x8xf32>
    %103 = tpu.matmul %89, %102, %cst_29 {dimension_numbers = #tpu.dot_dimension_numbers<[0], [1], [1], [0], [0, 1, 1, 0], [], []>} : vector<8x8xf32>, vector<8x8xf32>, vector<8x8xf32> -> vector<8x8xf32>
    %104 = vector.extract_strided_slice %84 {offsets = [0, 8], sizes = [8, 8], strides = [1, 1]} : vector<8x32xf32> to vector<8x8xf32>
    %105 = vector.extract_strided_slice %85 {offsets = [0, 8], sizes = [8, 8], strides = [1, 1]} : vector<8x32xf32> to vector<8x8xf32>
    %106 = vector.extract_strided_slice %86 {offsets = [0, 8], sizes = [8, 8], strides = [1, 1]} : vector<8x32xf32> to vector<8x8xf32>
    %cst_30 = arith.constant dense<0.000000e+00> : vector<8x8xf32>
    %107 = tpu.matmul %104, %105, %cst_30 {dimension_numbers = #tpu.dot_dimension_numbers<[1], [1], [0], [0], [0, 0, 1, 0], [], []>} : vector<8x8xf32>, vector<8x8xf32>, vector<8x8xf32> -> vector<8x8xf32>
    %cst_31 = arith.constant -1.000000e+30 : f32
    %108 = vector.broadcast %cst_31 : f32 to vector<8x8xf32>
    %109 = arith.select %11, %108, %107 : vector<8x8xi1>, vector<8x8xf32>
    %cst_32 = arith.constant dense<0xFF800000> : vector<8xf32>
    %110 = vector.multi_reduction <maximumf>, %109, %cst_32 [1] : vector<8x8xf32> to vector<8xf32>
    %111 = vector.shape_cast %110 : vector<8xf32> to vector<8x1xf32>
    %112 = vector.broadcast %111 : vector<8x1xf32> to vector<8x8xf32>
    %113 = arith.subf %109, %112 : vector<8x8xf32>
    %114 = math.exp %113 : vector<8x8xf32>
    %cst_33 = arith.constant dense<0.000000e+00> : vector<8xf32>
    %115 = vector.multi_reduction <add>, %114, %cst_33 [1] : vector<8x8xf32> to vector<8xf32>
    %116 = vector.shape_cast %115 : vector<8xf32> to vector<8x1xf32>
    %117 = tpu.reciprocal %116 {approx = true} : vector<8x1xf32> -> vector<8x1xf32>
    %118 = vector.broadcast %117 : vector<8x1xf32> to vector<8x8xf32>
    %119 = arith.mulf %114, %118 : vector<8x8xf32>
    %cst_34 = arith.constant dense<0.000000e+00> : vector<8x8xf32>
    %120 = tpu.matmul %106, %119, %cst_34 {dimension_numbers = #tpu.dot_dimension_numbers<[0], [1], [1], [0], [0, 1, 1, 0], [], []>} : vector<8x8xf32>, vector<8x8xf32>, vector<8x8xf32> -> vector<8x8xf32>
    %121 = vector.extract_strided_slice %84 {offsets = [0, 16], sizes = [8, 8], strides = [1, 1]} : vector<8x32xf32> to vector<8x8xf32>
    %122 = vector.extract_strided_slice %85 {offsets = [0, 16], sizes = [8, 8], strides = [1, 1]} : vector<8x32xf32> to vector<8x8xf32>
    %123 = vector.extract_strided_slice %86 {offsets = [0, 16], sizes = [8, 8], strides = [1, 1]} : vector<8x32xf32> to vector<8x8xf32>
    %cst_35 = arith.constant dense<0.000000e+00> : vector<8x8xf32>
    %124 = tpu.matmul %121, %122, %cst_35 {dimension_numbers = #tpu.dot_dimension_numbers<[1], [1], [0], [0], [0, 0, 1, 0], [], []>} : vector<8x8xf32>, vector<8x8xf32>, vector<8x8xf32> -> vector<8x8xf32>
    %cst_36 = arith.constant -1.000000e+30 : f32
    %125 = vector.broadcast %cst_36 : f32 to vector<8x8xf32>
    %126 = arith.select %11, %125, %124 : vector<8x8xi1>, vector<8x8xf32>
    %cst_37 = arith.constant dense<0xFF800000> : vector<8xf32>
    %127 = vector.multi_reduction <maximumf>, %126, %cst_37 [1] : vector<8x8xf32> to vector<8xf32>
    %128 = vector.shape_cast %127 : vector<8xf32> to vector<8x1xf32>
    %129 = vector.broadcast %128 : vector<8x1xf32> to vector<8x8xf32>
    %130 = arith.subf %126, %129 : vector<8x8xf32>
    %131 = math.exp %130 : vector<8x8xf32>
    %cst_38 = arith.constant dense<0.000000e+00> : vector<8xf32>
    %132 = vector.multi_reduction <add>, %131, %cst_38 [1] : vector<8x8xf32> to vector<8xf32>
    %133 = vector.shape_cast %132 : vector<8xf32> to vector<8x1xf32>
    %134 = tpu.reciprocal %133 {approx = true} : vector<8x1xf32> -> vector<8x1xf32>
    %135 = vector.broadcast %134 : vector<8x1xf32> to vector<8x8xf32>
    %136 = arith.mulf %131, %135 : vector<8x8xf32>
    %cst_39 = arith.constant dense<0.000000e+00> : vector<8x8xf32>
    %137 = tpu.matmul %123, %136, %cst_39 {dimension_numbers = #tpu.dot_dimension_numbers<[0], [1], [1], [0], [0, 1, 1, 0], [], []>} : vector<8x8xf32>, vector<8x8xf32>, vector<8x8xf32> -> vector<8x8xf32>
    %138 = vector.extract_strided_slice %84 {offsets = [0, 24], sizes = [8, 8], strides = [1, 1]} : vector<8x32xf32> to vector<8x8xf32>
    %139 = vector.extract_strided_slice %85 {offsets = [0, 24], sizes = [8, 8], strides = [1, 1]} : vector<8x32xf32> to vector<8x8xf32>
    %140 = vector.extract_strided_slice %86 {offsets = [0, 24], sizes = [8, 8], strides = [1, 1]} : vector<8x32xf32> to vector<8x8xf32>
    %cst_40 = arith.constant dense<0.000000e+00> : vector<8x8xf32>
    %141 = tpu.matmul %138, %139, %cst_40 {dimension_numbers = #tpu.dot_dimension_numbers<[1], [1], [0], [0], [0, 0, 1, 0], [], []>} : vector<8x8xf32>, vector<8x8xf32>, vector<8x8xf32> -> vector<8x8xf32>
    %cst_41 = arith.constant -1.000000e+30 : f32
    %142 = vector.broadcast %cst_41 : f32 to vector<8x8xf32>
    %143 = arith.select %11, %142, %141 : vector<8x8xi1>, vector<8x8xf32>
    %cst_42 = arith.constant dense<0xFF800000> : vector<8xf32>
    %144 = vector.multi_reduction <maximumf>, %143, %cst_42 [1] : vector<8x8xf32> to vector<8xf32>
    %145 = vector.shape_cast %144 : vector<8xf32> to vector<8x1xf32>
    %146 = vector.broadcast %145 : vector<8x1xf32> to vector<8x8xf32>
    %147 = arith.subf %143, %146 : vector<8x8xf32>
    %148 = math.exp %147 : vector<8x8xf32>
    %cst_43 = arith.constant dense<0.000000e+00> : vector<8xf32>
    %149 = vector.multi_reduction <add>, %148, %cst_43 [1] : vector<8x8xf32> to vector<8xf32>
    %150 = vector.shape_cast %149 : vector<8xf32> to vector<8x1xf32>
    %151 = tpu.reciprocal %150 {approx = true} : vector<8x1xf32> -> vector<8x1xf32>
    %152 = vector.broadcast %151 : vector<8x1xf32> to vector<8x8xf32>
    %153 = arith.mulf %148, %152 : vector<8x8xf32>
    %cst_44 = arith.constant dense<0.000000e+00> : vector<8x8xf32>
    %154 = tpu.matmul %140, %153, %cst_44 {dimension_numbers = #tpu.dot_dimension_numbers<[0], [1], [1], [0], [0, 1, 1, 0], [], []>} : vector<8x8xf32>, vector<8x8xf32>, vector<8x8xf32> -> vector<8x8xf32>
    %155 = tpu.concatenate %103, %120, %137, %154 in 0 : vector<8x8xf32>, vector<8x8xf32>, vector<8x8xf32>, vector<8x8xf32> -> vector<32x8xf32>
    %156 = tpu.concatenate %83, %155 in 1 : vector<32x8xf32>, vector<32x8xf32> -> vector<32x16xf32>
    %c0_45 = arith.constant 0 : index
    %c0_46 = arith.constant 0 : index
    %157 = vector.load %arg6[%c0_45, %c0_46] : memref<32x32xf32, #tpu.memory_space<vmem>>, vector<32x32xf32>
    %cst_47 = arith.constant dense<0.000000e+00> : vector<32x16xf32>
    %158 = tpu.matmul %157, %156, %cst_47 {dimension_numbers = #tpu.dot_dimension_numbers<[1], [0], [0], [1], [0, 0, 1, 1], [], []>} : vector<32x32xf32>, vector<32x16xf32>, vector<32x16xf32> -> vector<32x16xf32>
    %159 = vector.extract_strided_slice %158 {offsets = [0, 0], sizes = [32, 8], strides = [1, 1]} : vector<32x16xf32> to vector<32x8xf32>
    %160 = vector.extract_strided_slice %159 {offsets = [0, 0], sizes = [8, 8], strides = [1, 1]} : vector<32x8xf32> to vector<8x8xf32>
    %161 = vector.extract_strided_slice %159 {offsets = [8, 0], sizes = [8, 8], strides = [1, 1]} : vector<32x8xf32> to vector<8x8xf32>
    %162 = vector.extract_strided_slice %159 {offsets = [16, 0], sizes = [8, 8], strides = [1, 1]} : vector<32x8xf32> to vector<8x8xf32>
    %163 = vector.extract_strided_slice %159 {offsets = [24, 0], sizes = [8, 8], strides = [1, 1]} : vector<32x8xf32> to vector<8x8xf32>
    %164 = tpu.concatenate %160, %161, %162, %163 in 1 : vector<8x8xf32>, vector<8x8xf32>, vector<8x8xf32>, vector<8x8xf32> -> vector<8x32xf32>
    %165 = vector.extract_strided_slice %158 {offsets = [0, 8], sizes = [32, 8], strides = [1, 1]} : vector<32x16xf32> to vector<32x8xf32>
    %166 = vector.extract_strided_slice %165 {offsets = [0, 0], sizes = [8, 8], strides = [1, 1]} : vector<32x8xf32> to vector<8x8xf32>
    %167 = vector.extract_strided_slice %165 {offsets = [8, 0], sizes = [8, 8], strides = [1, 1]} : vector<32x8xf32> to vector<8x8xf32>
    %168 = vector.extract_strided_slice %165 {offsets = [16, 0], sizes = [8, 8], strides = [1, 1]} : vector<32x8xf32> to vector<8x8xf32>
    %169 = vector.extract_strided_slice %165 {offsets = [24, 0], sizes = [8, 8], strides = [1, 1]} : vector<32x8xf32> to vector<8x8xf32>
    %170 = tpu.concatenate %166, %167, %168, %169 in 1 : vector<8x8xf32>, vector<8x8xf32>, vector<8x8xf32>, vector<8x8xf32> -> vector<8x32xf32>
    %171 = tpu.concatenate %164, %170 in 0 : vector<8x32xf32>, vector<8x32xf32> -> vector<16x32xf32>
    %c0_48 = arith.constant 0 : index
    %c0_49 = arith.constant 0 : index
    %172 = vector.load %arg4[%c0_48, %c0_49] : memref<32x32xf32, #tpu.memory_space<vmem>>, vector<32x32xf32>
    %cst_50 = arith.constant dense<0.000000e+00> : vector<16x32xf32>
    %173 = tpu.matmul %171, %172, %cst_50 {dimension_numbers = #tpu.dot_dimension_numbers<[1], [0], [0], [1], [0, 0, 1, 1], [], []>} : vector<16x32xf32>, vector<32x32xf32>, vector<16x32xf32> -> vector<16x32xf32>
    %c0_51 = arith.constant 0 : index
    %c0_52 = arith.constant 0 : index
    %174 = vector.load %arg5[%c0_51, %c0_52] : memref<1x32xf32, #tpu.memory_space<vmem>>, vector<1x32xf32>
    %175 = vector.broadcast %174 : vector<1x32xf32> to vector<16x32xf32>
    %176 = arith.addf %173, %175 : vector<16x32xf32>
    %177 = arith.addf %0, %176 : vector<16x32xf32>
    %c0_53 = arith.constant 0 : index
    %c0_54 = arith.constant 0 : index
    %178 = vector.load %arg7[%c0_53, %c0_54] : memref<1x32xf32, #tpu.memory_space<vmem>>, vector<1x32xf32>
    %c0_55 = arith.constant 0 : index
    %c0_56 = arith.constant 0 : index
    %179 = vector.load %arg8[%c0_55, %c0_56] : memref<1x32xf32, #tpu.memory_space<vmem>>, vector<1x32xf32>
    %cst_57 = arith.constant dense<0.000000e+00> : vector<16xf32>
    %180 = vector.multi_reduction <add>, %177, %cst_57 [1] : vector<16x32xf32> to vector<16xf32>
    %181 = vector.shape_cast %180 : vector<16xf32> to vector<16x1xf32>
    %cst_58 = arith.constant 3.200000e+01 : f32
    %182 = vector.broadcast %cst_58 : f32 to vector<16x1xf32>
    %183 = arith.divf %181, %182 : vector<16x1xf32>
    %184 = vector.broadcast %183 : vector<16x1xf32> to vector<16x32xf32>
    %185 = arith.subf %177, %184 : vector<16x32xf32>
    %186 = arith.mulf %185, %185 : vector<16x32xf32>
    %cst_59 = arith.constant dense<0.000000e+00> : vector<16xf32>
    %187 = vector.multi_reduction <add>, %186, %cst_59 [1] : vector<16x32xf32> to vector<16xf32>
    %188 = vector.shape_cast %187 : vector<16xf32> to vector<16x1xf32>
    %cst_60 = arith.constant 3.200000e+01 : f32
    %189 = vector.broadcast %cst_60 : f32 to vector<16x1xf32>
    %190 = arith.divf %188, %189 : vector<16x1xf32>
    %cst_61 = arith.constant 9.99999974E-6 : f32
    %191 = vector.broadcast %cst_61 : f32 to vector<16x1xf32>
    %192 = arith.addf %190, %191 : vector<16x1xf32>
    %193 = math.rsqrt %192 : vector<16x1xf32>
    %194 = vector.broadcast %193 : vector<16x1xf32> to vector<16x32xf32>
    %195 = arith.mulf %185, %194 : vector<16x32xf32>
    %196 = vector.broadcast %178 : vector<1x32xf32> to vector<16x32xf32>
    %197 = arith.mulf %195, %196 : vector<16x32xf32>
    %198 = vector.broadcast %179 : vector<1x32xf32> to vector<16x32xf32>
    %199 = arith.addf %197, %198 : vector<16x32xf32>
    %c0_62 = arith.constant 0 : index
    %c0_63 = arith.constant 0 : index
    %200 = vector.load %arg9[%c0_62, %c0_63] : memref<32x64xf32, #tpu.memory_space<vmem>>, vector<32x64xf32>
    %cst_64 = arith.constant dense<0.000000e+00> : vector<16x64xf32>
    %201 = tpu.matmul %199, %200, %cst_64 {dimension_numbers = #tpu.dot_dimension_numbers<[1], [0], [0], [1], [0, 0, 1, 1], [], []>} : vector<16x32xf32>, vector<32x64xf32>, vector<16x64xf32> -> vector<16x64xf32>
    %c0_65 = arith.constant 0 : index
    %c0_66 = arith.constant 0 : index
    %202 = vector.load %arg10[%c0_65, %c0_66] : memref<1x64xf32, #tpu.memory_space<vmem>>, vector<1x64xf32>
    %203 = vector.broadcast %202 : vector<1x64xf32> to vector<16x64xf32>
    %204 = arith.addf %201, %203 : vector<16x64xf32>
    %cst_67 = arith.constant 0.000000e+00 : f32
    %205 = vector.broadcast %cst_67 : f32 to vector<16x64xf32>
    %206 = arith.maximumf %204, %205 : vector<16x64xf32>
    %c0_68 = arith.constant 0 : index
    %c0_69 = arith.constant 0 : index
    %207 = vector.load %arg11[%c0_68, %c0_69] : memref<64x32xf32, #tpu.memory_space<vmem>>, vector<64x32xf32>
    %cst_70 = arith.constant dense<0.000000e+00> : vector<16x32xf32>
    %208 = tpu.matmul %206, %207, %cst_70 {dimension_numbers = #tpu.dot_dimension_numbers<[1], [0], [0], [1], [0, 0, 1, 1], [], []>} : vector<16x64xf32>, vector<64x32xf32>, vector<16x32xf32> -> vector<16x32xf32>
    %c0_71 = arith.constant 0 : index
    %c0_72 = arith.constant 0 : index
    %209 = vector.load %arg12[%c0_71, %c0_72] : memref<1x32xf32, #tpu.memory_space<vmem>>, vector<1x32xf32>
    %210 = vector.broadcast %209 : vector<1x32xf32> to vector<16x32xf32>
    %211 = arith.addf %208, %210 : vector<16x32xf32>
    %212 = arith.addf %199, %211 : vector<16x32xf32>
    %c0_73 = arith.constant 0 : index
    %c0_74 = arith.constant 0 : index
    %213 = vector.load %arg13[%c0_73, %c0_74] : memref<1x32xf32, #tpu.memory_space<vmem>>, vector<1x32xf32>
    %c0_75 = arith.constant 0 : index
    %c0_76 = arith.constant 0 : index
    %214 = vector.load %arg14[%c0_75, %c0_76] : memref<1x32xf32, #tpu.memory_space<vmem>>, vector<1x32xf32>
    %cst_77 = arith.constant dense<0.000000e+00> : vector<16xf32>
    %215 = vector.multi_reduction <add>, %212, %cst_77 [1] : vector<16x32xf32> to vector<16xf32>
    %216 = vector.shape_cast %215 : vector<16xf32> to vector<16x1xf32>
    %cst_78 = arith.constant 3.200000e+01 : f32
    %217 = vector.broadcast %cst_78 : f32 to vector<16x1xf32>
    %218 = arith.divf %216, %217 : vector<16x1xf32>
    %219 = vector.broadcast %218 : vector<16x1xf32> to vector<16x32xf32>
    %220 = arith.subf %212, %219 : vector<16x32xf32>
    %221 = arith.mulf %220, %220 : vector<16x32xf32>
    %cst_79 = arith.constant dense<0.000000e+00> : vector<16xf32>
    %222 = vector.multi_reduction <add>, %221, %cst_79 [1] : vector<16x32xf32> to vector<16xf32>
    %223 = vector.shape_cast %222 : vector<16xf32> to vector<16x1xf32>
    %cst_80 = arith.constant 3.200000e+01 : f32
    %224 = vector.broadcast %cst_80 : f32 to vector<16x1xf32>
    %225 = arith.divf %223, %224 : vector<16x1xf32>
    %cst_81 = arith.constant 9.99999974E-6 : f32
    %226 = vector.broadcast %cst_81 : f32 to vector<16x1xf32>
    %227 = arith.addf %225, %226 : vector<16x1xf32>
    %228 = math.rsqrt %227 : vector<16x1xf32>
    %229 = vector.broadcast %228 : vector<16x1xf32> to vector<16x32xf32>
    %230 = arith.mulf %220, %229 : vector<16x32xf32>
    %231 = vector.broadcast %213 : vector<1x32xf32> to vector<16x32xf32>
    %232 = arith.mulf %230, %231 : vector<16x32xf32>
    %233 = vector.broadcast %214 : vector<1x32xf32> to vector<16x32xf32>
    %234 = arith.addf %232, %233 : vector<16x32xf32>
    %c0_82 = arith.constant 0 : index
    %c0_83 = arith.constant 0 : index
    %235 = vector.load %arg15[%c0_82, %c0_83] : memref<16x32xf32, #tpu.memory_space<vmem>>, vector<16x32xf32>
    tpu.vector_store %arg15[%c0_82, %c0_83], %234 {strides = array<i32>} : memref<16x32xf32, #tpu.memory_space<vmem>>, vector<16x32xf32>,
    return
  }
  func.func @transform_0(%arg0: i32) -> (i32, i32) {
    %c0_i32 = arith.constant 0 : i32
    %c0_i32_0 = arith.constant 0 : i32
    return %arg0, %c0_i32 : i32, i32
  }
  func.func @transform_1(%arg0: i32) -> (i32, i32) {
    %c0_i32 = arith.constant 0 : i32
    %c0_i32_0 = arith.constant 0 : i32
    %c0_i32_1 = arith.constant 0 : i32
    return %c0_i32, %c0_i32_0 : i32, i32
  }
  func.func @transform_2(%arg0: i32) -> (i32, i32) {
    %c0_i32 = arith.constant 0 : i32
    %c0_i32_0 = arith.constant 0 : i32
    %c0_i32_1 = arith.constant 0 : i32
    return %c0_i32, %c0_i32_0 : i32, i32
  }
  func.func @transform_3(%arg0: i32) -> (i32, i32) {
    %c0_i32 = arith.constant 0 : i32
    %c0_i32_0 = arith.constant 0 : i32
    %c0_i32_1 = arith.constant 0 : i32
    return %c0_i32, %c0_i32_0 : i32, i32
  }
  func.func @transform_4(%arg0: i32) -> (i32, i32) {
    %c0_i32 = arith.constant 0 : i32
    %c0_i32_0 = arith.constant 0 : i32
    %c0_i32_1 = arith.constant 0 : i32
    return %c0_i32, %c0_i32_0 : i32, i32
  }
  func.func @transform_5(%arg0: i32) -> (i32, i32) {
    %c0_i32 = arith.constant 0 : i32
    %c0_i32_0 = arith.constant 0 : i32
    %c0_i32_1 = arith.constant 0 : i32
    return %c0_i32, %c0_i32_0 : i32, i32
  }
  func.func @transform_6(%arg0: i32) -> (i32, i32) {
    %c0_i32 = arith.constant 0 : i32
    %c0_i32_0 = arith.constant 0 : i32
    %c0_i32_1 = arith.constant 0 : i32
    return %c0_i32, %c0_i32_0 : i32, i32
  }
  func.func @transform_7(%arg0: i32) -> (i32, i32) {
    %c0_i32 = arith.constant 0 : i32
    %c0_i32_0 = arith.constant 0 : i32
    %c0_i32_1 = arith.constant 0 : i32
    return %c0_i32, %c0_i32_0 : i32, i32
  }
  func.func @transform_8(%arg0: i32) -> (i32, i32) {
    %c0_i32 = arith.constant 0 : i32
    %c0_i32_0 = arith.constant 0 : i32
    %c0_i32_1 = arith.constant 0 : i32
    return %c0_i32, %c0_i32_0 : i32, i32
  }
  func.func @transform_9(%arg0: i32) -> (i32, i32) {
    %c0_i32 = arith.constant 0 : i32
    %c0_i32_0 = arith.constant 0 : i32
    %c0_i32_1 = arith.constant 0 : i32
    return %c0_i32, %c0_i32_0 : i32, i32
  }
  func.func @transform_10(%arg0: i32) -> (i32, i32) {
    %c0_i32 = arith.constant 0 : i32
    %c0_i32_0 = arith.constant 0 : i32
    %c0_i32_1 = arith.constant 0 : i32
    return %c0_i32, %c0_i32_0 : i32, i32
  }
  func.func @transform_11(%arg0: i32) -> (i32, i32) {
    %c0_i32 = arith.constant 0 : i32
    %c0_i32_0 = arith.constant 0 : i32
    %c0_i32_1 = arith.constant 0 : i32
    return %c0_i32, %c0_i32_0 : i32, i32
  }
  func.func @transform_12(%arg0: i32) -> (i32, i32) {
    %c0_i32 = arith.constant 0 : i32
    %c0_i32_0 = arith.constant 0 : i32
    %c0_i32_1 = arith.constant 0 : i32
    return %c0_i32, %c0_i32_0 : i32, i32
  }
  func.func @transform_13(%arg0: i32) -> (i32, i32) {
    %c0_i32 = arith.constant 0 : i32
    %c0_i32_0 = arith.constant 0 : i32
    %c0_i32_1 = arith.constant 0 : i32
    return %c0_i32, %c0_i32_0 : i32, i32
  }
  func.func @transform_14(%arg0: i32) -> (i32, i32) {
    %c0_i32 = arith.constant 0 : i32
    %c0_i32_0 = arith.constant 0 : i32
    return %arg0, %c0_i32 : i32, i32
  }
}

</mosaic_0001>

<llo_original>
// kernel: tpu_custom_call.1
$region0: #{tpu_custom_call.1}
  #allocation0 [shape = 'u32[]', space=smem, size = 0x4, offset = 0x4, fixed_abs, tag = 'smem constant byte address 0x4 - core index']
  #allocation1 [shape = 'u32[72,128]{1,0:T(1,128)}', space=vmem, size = 0x9000, scoped, tag = 'internal scratch']
  %s0 = inlined_call_operand.vmem [shape: f32[32,32], index: 0, kind: input, shape index: {}]
  %s1 = inlined_call_operand.vmem [shape: f32[32,96], index: 1, kind: input, shape index: {}]
  %s2 = inlined_call_operand.vmem [shape: f32[1,96], index: 2, kind: input, shape index: {}]
  %s3 = inlined_call_operand.vmem [shape: f32[32,32], index: 3, kind: input, shape index: {}]
  %s4 = inlined_call_operand.vmem [shape: f32[1,32], index: 4, kind: input, shape index: {}]
  %s5 = inlined_call_operand.hbm [shape: f32[32,32], index: 5, kind: input, shape index: {}]
  %s6 = inlined_call_operand.vmem [shape: f32[1,32], index: 6, kind: input, shape index: {}]
  %s7 = inlined_call_operand.vmem [shape: f32[1,32], index: 7, kind: input, shape index: {}]
  %s8 = inlined_call_operand.hbm [shape: f32[32,64], index: 8, kind: input, shape index: {}]
  %s9 = inlined_call_operand.vmem [shape: f32[1,64], index: 9, kind: input, shape index: {}]
  %s10 = inlined_call_operand.vmem [shape: f32[64,32], index: 10, kind: input, shape index: {}]
  %s11 = inlined_call_operand.vmem [shape: f32[1,32], index: 11, kind: input, shape index: {}]
  %s12 = inlined_call_operand.vmem [shape: f32[1,32], index: 12, kind: input, shape index: {}]
  %s13 = inlined_call_operand.vmem [shape: f32[1,32], index: 13, kind: input, shape index: {}]
  %s14 = inlined_call_operand.hbm [shape: f32[32,32], index: 14, kind: output, shape index: {}]
  %s15 = sld [smem:[#allocation0]]
  $region97: #{tpu_custom_call.1} parent=0
    _
  %s17 = ssub.s32 1, %s15
  %s18 = scalar_select 0, %s17, %s15
  $region1: #{tpu_custom_call.1} parent=0
    #allocation2 [shape = 'u8[16384]{0}', space=vmem, size = 0x4000, scoped, tag = 'input window, operand 5, single buffered']
    #allocation3 [shape = 's32[2]{0}', space=sflag, size = 0x8, scoped, tag = 'scoped memory for tpu_custom_call.1']
    #allocation4 [shape = 's32[2]{0}', space=sflag, size = 0x8, scoped, tag = 'scoped memory for tpu_custom_call.1']
    #allocation5 [shape = 'u8[16384]{0}', space=vmem, size = 0x4000, scoped, tag = 'input window, operand 8, single buffered']
    #allocation6 [shape = 's32[1]{0}', space=sflag, size = 0x4, scoped, tag = 'scoped memory for tpu_custom_call.1']
    #allocation7 [shape = 'u8[16384]{0}', space=vmem, size = 0x4000, scoped, tag = 'output window, operand 0']
    %19 = vsyncpa [#allocation3], 0
    %20 = vsyncpa [#allocation6], 0
    %21 = vsyncpa [#allocation4], 0
    %s22 = scalar_lea.sflag [#allocation4], 1
    %23 = vsyncpa %s22, 0
    loop: start=0, step=1, limit=4
    $region2: #{tpu_custom_call.1} parent=1 // loop_pre_header
      _
    $region3: #{tpu_custom_call.1} parent=1 // loop_header
      %s25 = sphi 0, %s29
      %p26 = scmp.ge.s32.totalorder %s25, 4
      %s35 = sphi 0, %s37
      %s38 = sphi 0, %s35
      %s39 = sphi 0, %s38
      %s55 = sphi 0, %s39
      %s59 = sphi 0, %s59
      %s61 = sphi 0, %s59
      %s62 = sphi 0, %s61
      %s76 = sphi 0, %s62
      %s80 = sphi 0, %s80
      %s82 = sphi 0, %s80
      %s83 = sphi 0, %s82
      %s97 = sphi 0, %s83
      %s101 = sphi 0, %s101
      %s103 = sphi 0, %s101
      %s104 = sphi 0, %s103
      %s118 = sphi 0, %s104
      %s122 = sphi 0, %s122
      %s124 = sphi 0, %s122
      %s125 = sphi 0, %s124
      %s139 = sphi 0, %s125
      %s143 = sphi 0, %s143
      %s145 = sphi 0, %s143
      %s146 = sphi 0, %s145
      %s160 = sphi 0, %s146
      %s164 = sphi 0, %s164
      %s166 = sphi 0, %s164
      %s167 = sphi 0, %s166
      %s181 = sphi 0, %s167
      %s185 = sphi 0, %s185
      %s187 = sphi 0, %s185
      %s188 = sphi 0, %s187
      %s202 = sphi 0, %s188
      %s206 = sphi 0, %s206
      %s208 = sphi 0, %s206
      %s209 = sphi 0, %s208
      %s223 = sphi 0, %s209
      %s227 = sphi 0, %s227
      %s229 = sphi 0, %s227
      %s230 = sphi 0, %s229
      %s244 = sphi 0, %s230
      %s248 = sphi 0, %s248
      %s250 = sphi 0, %s248
      %s251 = sphi 0, %s250
      %s265 = sphi 0, %s251
      %s269 = sphi 0, %s269
      %s271 = sphi 0, %s269
      %s272 = sphi 0, %s271
      %s286 = sphi 0, %s272
      %s290 = sphi 0, %s290
      %s292 = sphi 0, %s290
      %s293 = sphi 0, %s292
      %s307 = sphi 0, %s293
      %s311 = sphi 0, %s311
      %s313 = sphi 0, %s311
      %s314 = sphi 0, %s313
      %s328 = sphi 0, %s314
      %s334 = sphi 0, %s336
      %s337 = sphi 0, %s334
      %s338 = sphi 0, %s337
      %s354 = sphi 0, %s338
    $region4: #{tpu_custom_call.1} parent=1 // loop_header_branch
      %28 = sbr.rel (%p26) target = $region8
    $region5: #{tpu_custom_call.1} parent=1 // loop_body
      %s30 = ssub.s32 %s25, 1
      %s31 = ssub.s32 %s25, 2
      %s32 = sadd.s32 %s25, 1
      %s33 = ssub.s32 %s25, %s32
      %p34 = scmp.eq.s32.totalorder %s33, 0
      %s36 = sadd.s32 %s35, 1
      %s37 = scalar_select %p34, %s35, %s36
      %p40 = pneg %p34
      %p41 = scmp.eq.s32.totalorder %s25, 1
      %p42 = por %p40, %p41
      %p43 = scmp.ne.s32.totalorder %s35, %s38
      %p44 = scmp.eq.s32.totalorder %s25, 0
      %p45 = por %p43, %p44
      %p46 = scmp.ne.s32.totalorder %s35, %s38
      %p47 = scmp.eq.s32.totalorder %s30, 1
      %p48 = por %p46, %p47
      %p49 = scmp.ne.s32.totalorder %s38, %s39
      %p50 = scmp.eq.s32.totalorder %s30, 0
      %p51 = por %p49, %p50
      %p52 = scmp.ne.s32.totalorder %s38, %s39
      %p53 = scmp.eq.s32.totalorder %s31, 1
      %p54 = por %p52, %p53
      %p56 = scmp.ne.s32.totalorder %s39, %s55
      %p57 = scmp.eq.s32.totalorder %s31, 0
      %p58 = por %p56, %p57
      %s60 = sadd.s32 %s59, 1
      %p63 = scmp.eq.s32.totalorder %s25, 1
      %p64 = scmp.ne.s32.totalorder %s59, %s61
      %p65 = scmp.eq.s32.totalorder %s25, 0
      %p66 = por %p64, %p65
      %p67 = scmp.ne.s32.totalorder %s59, %s61
      %p68 = scmp.eq.s32.totalorder %s30, 1
      %p69 = por %p67, %p68
      %p70 = scmp.ne.s32.totalorder %s61, %s62
      %p71 = scmp.eq.s32.totalorder %s30, 0
      %p72 = por %p70, %p71
      %p73 = scmp.ne.s32.totalorder %s61, %s62
      %p74 = scmp.eq.s32.totalorder %s31, 1
      %p75 = por %p73, %p74
      %p77 = scmp.ne.s32.totalorder %s62, %s76
      %p78 = scmp.eq.s32.totalorder %s31, 0
      %p79 = por %p77, %p78
      %s81 = sadd.s32 %s80, 1
      %p84 = scmp.eq.s32.totalorder %s25, 1
      %p85 = scmp.ne.s32.totalorder %s80, %s82
      %p86 = scmp.eq.s32.totalorder %s25, 0
      %p87 = por %p85, %p86
      %p88 = scmp.ne.s32.totalorder %s80, %s82
      %p89 = scmp.eq.s32.totalorder %s30, 1
      %p90 = por %p88, %p89
      %p91 = scmp.ne.s32.totalorder %s82, %s83
      %p92 = scmp.eq.s32.totalorder %s30, 0
      %p93 = por %p91, %p92
      %p94 = scmp.ne.s32.totalorder %s82, %s83
      %p95 = scmp.eq.s32.totalorder %s31, 1
      %p96 = por %p94, %p95
      %p98 = scmp.ne.s32.totalorder %s83, %s97
      %p99 = scmp.eq.s32.totalorder %s31, 0
      %p100 = por %p98, %p99
      %s102 = sadd.s32 %s101, 1
      %p105 = scmp.eq.s32.totalorder %s25, 1
      %p106 = scmp.ne.s32.totalorder %s101, %s103
      %p107 = scmp.eq.s32.totalorder %s25, 0
      %p108 = por %p106, %p107
      %p109 = scmp.ne.s32.totalorder %s101, %s103
      %p110 = scmp.eq.s32.totalorder %s30, 1
      %p111 = por %p109, %p110
      %p112 = scmp.ne.s32.totalorder %s103, %s104
      %p113 = scmp.eq.s32.totalorder %s30, 0
      %p114 = por %p112, %p113
      %p115 = scmp.ne.s32.totalorder %s103, %s104
      %p116 = scmp.eq.s32.totalorder %s31, 1
      %p117 = por %p115, %p116
      %p119 = scmp.ne.s32.totalorder %s104, %s118
      %p120 = scmp.eq.s32.totalorder %s31, 0
      %p121 = por %p119, %p120
      %s123 = sadd.s32 %s122, 1
      %p126 = scmp.eq.s32.totalorder %s25, 1
      %p127 = scmp.ne.s32.totalorder %s122, %s124
      %p128 = scmp.eq.s32.totalorder %s25, 0
      %p129 = por %p127, %p128
      %p130 = scmp.ne.s32.totalorder %s122, %s124
      %p131 = scmp.eq.s32.totalorder %s30, 1
      %p132 = por %p130, %p131
      %p133 = scmp.ne.s32.totalorder %s124, %s125
      %p134 = scmp.eq.s32.totalorder %s30, 0
      %p135 = por %p133, %p134
      %p136 = scmp.ne.s32.totalorder %s124, %s125
      %p137 = scmp.eq.s32.totalorder %s31, 1
      %p138 = por %p136, %p137
      %p140 = scmp.ne.s32.totalorder %s125, %s139
      %p141 = scmp.eq.s32.totalorder %s31, 0
      %p142 = por %p140, %p141
      %s144 = sadd.s32 %s143, 1
      %p147 = scmp.eq.s32.totalorder %s25, 1
      %p148 = scmp.ne.s32.totalorder %s143, %s145
      %p149 = scmp.eq.s32.totalorder %s25, 0
      %p150 = por %p148, %p149
      %p151 = scmp.ne.s32.totalorder %s143, %s145
      %p152 = scmp.eq.s32.totalorder %s30, 1
      %p153 = por %p151, %p152
      %p154 = scmp.ne.s32.totalorder %s145, %s146
      %p155 = scmp.eq.s32.totalorder %s30, 0
      %p156 = por %p154, %p155
      %p157 = scmp.ne.s32.totalorder %s145, %s146
      %p158 = scmp.eq.s32.totalorder %s31, 1
      %p159 = por %p157, %p158
      %p161 = scmp.ne.s32.totalorder %s146, %s160
      %p162 = scmp.eq.s32.totalorder %s31, 0
      %p163 = por %p161, %p162
      %s165 = sadd.s32 %s164, 1
      %p168 = scmp.eq.s32.totalorder %s25, 1
      %p169 = scmp.ne.s32.totalorder %s164, %s166
      %p170 = scmp.eq.s32.totalorder %s25, 0
      %p171 = por %p169, %p170
      %p172 = scmp.ne.s32.totalorder %s164, %s166
      %p173 = scmp.eq.s32.totalorder %s30, 1
      %p174 = por %p172, %p173
      %p175 = scmp.ne.s32.totalorder %s166, %s167
      %p176 = scmp.eq.s32.totalorder %s30, 0
      %p177 = por %p175, %p176
      %p178 = scmp.ne.s32.totalorder %s166, %s167
      %p179 = scmp.eq.s32.totalorder %s31, 1
      %p180 = por %p178, %p179
      %p182 = scmp.ne.s32.totalorder %s167, %s181
      %p183 = scmp.eq.s32.totalorder %s31, 0
      %p184 = por %p182, %p183
      %s186 = sadd.s32 %s185, 1
      %p189 = scmp.eq.s32.totalorder %s25, 1
      %p190 = scmp.ne.s32.totalorder %s185, %s187
      %p191 = scmp.eq.s32.totalorder %s25, 0
      %p192 = por %p190, %p191
      %p193 = scmp.ne.s32.totalorder %s185, %s187
      %p194 = scmp.eq.s32.totalorder %s30, 1
      %p195 = por %p193, %p194
      %p196 = scmp.ne.s32.totalorder %s187, %s188
      %p197 = scmp.eq.s32.totalorder %s30, 0
      %p198 = por %p196, %p197
      %p199 = scmp.ne.s32.totalorder %s187, %s188
      %p200 = scmp.eq.s32.totalorder %s31, 1
      %p201 = por %p199, %p200
      %p203 = scmp.ne.s32.totalorder %s188, %s202
      %p204 = scmp.eq.s32.totalorder %s31, 0
      %p205 = por %p203, %p204
      %s207 = sadd.s32 %s206, 1
      %p210 = scmp.eq.s32.totalorder %s25, 1
      %p211 = scmp.ne.s32.totalorder %s206, %s208
      %p212 = scmp.eq.s32.totalorder %s25, 0
      %p213 = por %p211, %p212
      %p214 = scmp.ne.s32.totalorder %s206, %s208
      %p215 = scmp.eq.s32.totalorder %s30, 1
      %p216 = por %p214, %p215
      %p217 = scmp.ne.s32.totalorder %s208, %s209
      %p218 = scmp.eq.s32.totalorder %s30, 0
      %p219 = por %p217, %p218
      %p220 = scmp.ne.s32.totalorder %s208, %s209
      %p221 = scmp.eq.s32.totalorder %s31, 1
      %p222 = por %p220, %p221
      %p224 = scmp.ne.s32.totalorder %s209, %s223
      %p225 = scmp.eq.s32.totalorder %s31, 0
      %p226 = por %p224, %p225
      %s228 = sadd.s32 %s227, 1
      %p231 = scmp.eq.s32.totalorder %s25, 1
      %p232 = scmp.ne.s32.totalorder %s227, %s229
      %p233 = scmp.eq.s32.totalorder %s25, 0
      %p234 = por %p232, %p233
      %p235 = scmp.ne.s32.totalorder %s227, %s229
      %p236 = scmp.eq.s32.totalorder %s30, 1
      %p237 = por %p235, %p236
      %p238 = scmp.ne.s32.totalorder %s229, %s230
      %p239 = scmp.eq.s32.totalorder %s30, 0
      %p240 = por %p238, %p239
      %p241 = scmp.ne.s32.totalorder %s229, %s230
      %p242 = scmp.eq.s32.totalorder %s31, 1
      %p243 = por %p241, %p242
      %p245 = scmp.ne.s32.totalorder %s230, %s244
      %p246 = scmp.eq.s32.totalorder %s31, 0
      %p247 = por %p245, %p246
      %s249 = sadd.s32 %s248, 1
      %p252 = scmp.eq.s32.totalorder %s25, 1
      %p253 = scmp.ne.s32.totalorder %s248, %s250
      %p254 = scmp.eq.s32.totalorder %s25, 0
      %p255 = por %p253, %p254
      %p256 = scmp.ne.s32.totalorder %s248, %s250
      %p257 = scmp.eq.s32.totalorder %s30, 1
      %p258 = por %p256, %p257
      %p259 = scmp.ne.s32.totalorder %s250, %s251
      %p260 = scmp.eq.s32.totalorder %s30, 0
      %p261 = por %p259, %p260
      %p262 = scmp.ne.s32.totalorder %s250, %s251
      %p263 = scmp.eq.s32.totalorder %s31, 1
      %p264 = por %p262, %p263
      %p266 = scmp.ne.s32.totalorder %s251, %s265
      %p267 = scmp.eq.s32.totalorder %s31, 0
      %p268 = por %p266, %p267
      %s270 = sadd.s32 %s269, 1
      %p273 = scmp.eq.s32.totalorder %s25, 1
      %p274 = scmp.ne.s32.totalorder %s269, %s271
      %p275 = scmp.eq.s32.totalorder %s25, 0
      %p276 = por %p274, %p275
      %p277 = scmp.ne.s32.totalorder %s269, %s271
      %p278 = scmp.eq.s32.totalorder %s30, 1
      %p279 = por %p277, %p278
      %p280 = scmp.ne.s32.totalorder %s271, %s272
      %p281 = scmp.eq.s32.totalorder %s30, 0
      %p282 = por %p280, %p281
      %p283 = scmp.ne.s32.totalorder %s271, %s272
      %p284 = scmp.eq.s32.totalorder %s31, 1
      %p285 = por %p283, %p284
      %p287 = scmp.ne.s32.totalorder %s272, %s286
      %p288 = scmp.eq.s32.totalorder %s31, 0
      %p289 = por %p287, %p288
      %s291 = sadd.s32 %s290, 1
      %p294 = scmp.eq.s32.totalorder %s25, 1
      %p295 = scmp.ne.s32.totalorder %s290, %s292
      %p296 = scmp.eq.s32.totalorder %s25, 0
      %p297 = por %p295, %p296
      %p298 = scmp.ne.s32.totalorder %s290, %s292
      %p299 = scmp.eq.s32.totalorder %s30, 1
      %p300 = por %p298, %p299
      %p301 = scmp.ne.s32.totalorder %s292, %s293
      %p302 = scmp.eq.s32.totalorder %s30, 0
      %p303 = por %p301, %p302
      %p304 = scmp.ne.s32.totalorder %s292, %s293
      %p305 = scmp.eq.s32.totalorder %s31, 1
      %p306 = por %p304, %p305
      %p308 = scmp.ne.s32.totalorder %s293, %s307
      %p309 = scmp.eq.s32.totalorder %s31, 0
      %p310 = por %p308, %p309
      %s312 = sadd.s32 %s311, 1
      %p315 = scmp.eq.s32.totalorder %s25, 1
      %p316 = scmp.ne.s32.totalorder %s311, %s313
      %p317 = scmp.eq.s32.totalorder %s25, 0
      %p318 = por %p316, %p317
      %p319 = scmp.ne.s32.totalorder %s311, %s313
      %p320 = scmp.eq.s32.totalorder %s30, 1
      %p321 = por %p319, %p320
      %p322 = scmp.ne.s32.totalorder %s313, %s314
      %p323 = scmp.eq.s32.totalorder %s30, 0
      %p324 = por %p322, %p323
      %p325 = scmp.ne.s32.totalorder %s313, %s314
      %p326 = scmp.eq.s32.totalorder %s31, 1
      %p327 = por %p325, %p326
      %p329 = scmp.ne.s32.totalorder %s314, %s328
      %p330 = scmp.eq.s32.totalorder %s31, 0
      %p331 = por %p329, %p330
      %s332 = ssub.s32 %s25, %s32
      %p333 = scmp.eq.s32.totalorder %s332, 0
      %s335 = sadd.s32 %s334, 1
      %s336 = scalar_select %p333, %s334, %s335
      %p339 = pneg %p333
      %p340 = scmp.eq.s32.totalorder %s25, 1
      %p341 = por %p339, %p340
      %p342 = scmp.ne.s32.totalorder %s334, %s337
      %p343 = scmp.eq.s32.totalorder %s25, 0
      %p344 = por %p342, %p343
      %p345 = scmp.ne.s32.totalorder %s334, %s337
      %p346 = scmp.eq.s32.totalorder %s30, 1
      %p347 = por %p345, %p346
      %p348 = scmp.ne.s32.totalorder %s337, %s338
      %p349 = scmp.eq.s32.totalorder %s30, 0
      %p350 = por %p348, %p349
      %p351 = scmp.ne.s32.totalorder %s337, %s338
      %p352 = scmp.eq.s32.totalorder %s31, 1
      %p353 = por %p351, %p352
      %p355 = scmp.ne.s32.totalorder %s338, %s354
      %p356 = scmp.eq.s32.totalorder %s31, 0
      %p357 = por %p355, %p356
      %p358 = scmp.le.s32.totalorder 1, %s25
      %p359 = scmp.lt.s32.totalorder %s25, 3
      %p360 = pnand %p358, %p359
      %p361 = pneg %p360
      // Predicated region
      $region9: #{tpu_custom_call.1} parent=5 // pred_check
        _
      $region10: #{tpu_custom_call.1} parent=5 // pred_check_branch
        %363 = sbr.rel (%p360) target = $region12
      $region11: #{tpu_custom_call.1} parent=5 // pred_region
        %s364 = ssub.s32 %s25, 1
        // Predicated region
        $region13: #{tpu_custom_call.1} parent=11 // pred_check
          %p365 = pneg %p72
        $region14: #{tpu_custom_call.1} parent=11 // pred_check_branch
          %367 = sbr.rel (%p365) target = $region16
        $region15: #{tpu_custom_call.1} parent=11 // pred_region
          _
        $region16: #{tpu_custom_call.1} parent=11 // pred_fallthru
          _
        // Predicated region
        $region17: #{tpu_custom_call.1} parent=11 // pred_check
          %p368 = pneg %p93
        $region18: #{tpu_custom_call.1} parent=11 // pred_check_branch
          %370 = sbr.rel (%p368) target = $region20
        $region19: #{tpu_custom_call.1} parent=11 // pred_region
          _
        $region20: #{tpu_custom_call.1} parent=11 // pred_fallthru
          _
        // Predicated region
        $region21: #{tpu_custom_call.1} parent=11 // pred_check
          %p371 = pneg %p114
        $region22: #{tpu_custom_call.1} parent=11 // pred_check_branch
          %373 = sbr.rel (%p371) target = $region24
        $region23: #{tpu_custom_call.1} parent=11 // pred_region
          _
        $region24: #{tpu_custom_call.1} parent=11 // pred_fallthru
          _
        // Predicated region
        $region25: #{tpu_custom_call.1} parent=11 // pred_check
          %p374 = pneg %p135
        $region26: #{tpu_custom_call.1} parent=11 // pred_check_branch
          %376 = sbr.rel (%p374) target = $region28
        $region27: #{tpu_custom_call.1} parent=11 // pred_region
          _
        $region28: #{tpu_custom_call.1} parent=11 // pred_fallthru
          _
        // Predicated region
        $region29: #{tpu_custom_call.1} parent=11 // pred_check
          %p377 = pneg %p156
        $region30: #{tpu_custom_call.1} parent=11 // pred_check_branch
          %379 = sbr.rel (%p377) target = $region32
        $region31: #{tpu_custom_call.1} parent=11 // pred_region
          %381 = vsyncadd [#allocation3], 0
          %s382 = sshll.u32 %s5, 4
          %s383 = int_to_ptr.hbm [resolvable:$true] %s382
          %s384 = sshll.u32 [#allocation2], 4
          %s385 = int_to_ptr.vmem [resolvable:$true] %s384
          %390 = dma.hbm_to_vmem [thread:$0]  %s383, 512, %s385, [#allocation3], 128, 128, 8
        $region32: #{tpu_custom_call.1} parent=11 // pred_fallthru
          _
        // Predicated region
        $region33: #{tpu_custom_call.1} parent=11 // pred_check
          %p391 = pneg %p177
        $region34: #{tpu_custom_call.1} parent=11 // pred_check_branch
          %393 = sbr.rel (%p391) target = $region36
        $region35: #{tpu_custom_call.1} parent=11 // pred_region
          _
        $region36: #{tpu_custom_call.1} parent=11 // pred_fallthru
          _
        // Predicated region
        $region37: #{tpu_custom_call.1} parent=11 // pred_check
          %p394 = pneg %p198
        $region38: #{tpu_custom_call.1} parent=11 // pred_check_branch
          %396 = sbr.rel (%p394) target = $region40
        $region39: #{tpu_custom_call.1} parent=11 // pred_region
          _
        $region40: #{tpu_custom_call.1} parent=11 // pred_fallthru
          _
        // Predicated region
        $region41: #{tpu_custom_call.1} parent=11 // pred_check
          %p397 = pneg %p219
        $region42: #{tpu_custom_call.1} parent=11 // pred_check_branch
          %399 = sbr.rel (%p397) target = $region44
        $region43: #{tpu_custom_call.1} parent=11 // pred_region
          %401 = vsyncadd [#allocation6], 0
          %s402 = sshll.u32 %s8, 4
          %s403 = int_to_ptr.hbm [resolvable:$true] %s402
          %s404 = sshll.u32 [#allocation5], 4
          %s405 = int_to_ptr.vmem [resolvable:$true] %s404
          %410 = dma.hbm_to_vmem [thread:$0]  %s403, 512, %s405, [#allocation6], 128, 128, 8
        $region44: #{tpu_custom_call.1} parent=11 // pred_fallthru
          _
        // Predicated region
        $region45: #{tpu_custom_call.1} parent=11 // pred_check
          %p411 = pneg %p240
        $region46: #{tpu_custom_call.1} parent=11 // pred_check_branch
          %413 = sbr.rel (%p411) target = $region48
        $region47: #{tpu_custom_call.1} parent=11 // pred_region
          _
        $region48: #{tpu_custom_call.1} parent=11 // pred_fallthru
          _
        // Predicated region
        $region49: #{tpu_custom_call.1} parent=11 // pred_check
          %p414 = pneg %p261
        $region50: #{tpu_custom_call.1} parent=11 // pred_check_branch
          %416 = sbr.rel (%p414) target = $region52
        $region51: #{tpu_custom_call.1} parent=11 // pred_region
          _
        $region52: #{tpu_custom_call.1} parent=11 // pred_fallthru
          _
        // Predicated region
        $region53: #{tpu_custom_call.1} parent=11 // pred_check
          %p417 = pneg %p282
        $region54: #{tpu_custom_call.1} parent=11 // pred_check_branch
          %419 = sbr.rel (%p417) target = $region56
        $region55: #{tpu_custom_call.1} parent=11 // pred_region
          _
        $region56: #{tpu_custom_call.1} parent=11 // pred_fallthru
          _
        // Predicated region
        $region57: #{tpu_custom_call.1} parent=11 // pred_check
          %p420 = pneg %p303
        $region58: #{tpu_custom_call.1} parent=11 // pred_check_branch
          %422 = sbr.rel (%p420) target = $region60
        $region59: #{tpu_custom_call.1} parent=11 // pred_region
          _
        $region60: #{tpu_custom_call.1} parent=11 // pred_fallthru
          _
        // Predicated region
        $region61: #{tpu_custom_call.1} parent=11 // pred_check
          %p423 = pneg %p324
        $region62: #{tpu_custom_call.1} parent=11 // pred_check_branch
          %425 = sbr.rel (%p423) target = $region64
        $region63: #{tpu_custom_call.1} parent=11 // pred_region
          _
        $region64: #{tpu_custom_call.1} parent=11 // pred_fallthru
          _
      $region12: #{tpu_custom_call.1} parent=5 // pred_fallthru
        _
      %p426 = scmp.lt.s32.totalorder %s25, 2
      // Predicated region
      $region65: #{tpu_custom_call.1} parent=5 // pred_check
        %p427 = pneg %p426
      $region66: #{tpu_custom_call.1} parent=5 // pred_check_branch
        %429 = sbr.rel (%p427) target = $region68
      $region67: #{tpu_custom_call.1} parent=5 // pred_region
        // Predicated region
        $region69: #{tpu_custom_call.1} parent=67 // pred_check
          %p430 = pneg %p45
        $region70: #{tpu_custom_call.1} parent=67 // pred_check_branch
          %432 = sbr.rel (%p430) target = $region72
        $region71: #{tpu_custom_call.1} parent=67 // pred_region
          %s433 = smul.u32 2, %s25
          %p434 = scmp.lt.s32.totalorder %s433, 3
          %s435 = scalar_select %p434, %s433, 3
          %s436 = smul.addr %s435, 8
          %s437 = scalar_lea.vmem %s0, %s436
          %s438 = smul.u32 2, %s25
        $region72: #{tpu_custom_call.1} parent=67 // pred_fallthru
          _
      $region68: #{tpu_custom_call.1} parent=5 // pred_fallthru
        _
      %p439 = scmp.le.s32.totalorder 1, %s25
      %p440 = scmp.lt.s32.totalorder %s25, 3
      %p441 = pnand %p439, %p440
      %p442 = pneg %p441
      // Predicated region
      $region73: #{tpu_custom_call.1} parent=5 // pred_check
        _
      $region74: #{tpu_custom_call.1} parent=5 // pred_check_branch
        %444 = sbr.rel (%p441) target = $region76
      $region75: #{tpu_custom_call.1} parent=5 // pred_region
        %s445 = ssub.s32 %s25, 1
        // Predicated region
        $region77: #{tpu_custom_call.1} parent=75 // pred_check
          %p446 = pneg %p156
        $region78: #{tpu_custom_call.1} parent=75 // pred_check_branch
          %448 = sbr.rel (%p446) target = $region80
        $region79: #{tpu_custom_call.1} parent=75 // pred_region
          %450 = dma.done [#allocation3], 512
        $region80: #{tpu_custom_call.1} parent=75 // pred_fallthru
          _
        // Predicated region
        $region81: #{tpu_custom_call.1} parent=75 // pred_check
          %p451 = pneg %p219
        $region82: #{tpu_custom_call.1} parent=75 // pred_check_branch
          %453 = sbr.rel (%p451) target = $region84
        $region83: #{tpu_custom_call.1} parent=75 // pred_region
          %455 = dma.done [#allocation6], 512
        $region84: #{tpu_custom_call.1} parent=75 // pred_fallthru
          _
        %s456 = smul.u32 2, %s30
        %p457 = scmp.lt.s32.totalorder %s456, 3
        %s458 = scalar_select %p457, %s456, 3
        %s459 = smul.addr %s458, 8
        %s460 = scalar_lea.vmem %s0, %s459
        %p461 = pneg %p51
        %p462 = pneg %p48
        %p463 = pneg %p72
        %p464 = pneg %p69
        %p465 = pneg %p93
        %p466 = pneg %p90
        %p467 = pneg %p114
        %p468 = pneg %p111
        %p469 = pneg %p135
        %p470 = pneg %p132
        %p471 = pneg %p156
        %p472 = pneg %p153
        %p473 = pneg %p177
        %p474 = pneg %p174
        %p475 = pneg %p198
        %p476 = pneg %p195
        %p477 = pneg %p219
        %p478 = pneg %p216
        %p479 = pneg %p240
        %p480 = pneg %p237
        %p481 = pneg %p261
        %p482 = pneg %p258
        %p483 = pneg %p282
        %p484 = pneg %p279
        %p485 = pneg %p303
        %p486 = pneg %p300
        %p487 = pneg %p324
        %p488 = pneg %p321
        %p489 = pneg %p350
        %p490 = pneg %p347
        %s491 = sand.u32 %s337, 1
        %s492 = scalar_lea.sflag [#allocation4], %s491
        %s493 = sand.u32 %s337, 1
        %s494 = smul.addr %s493, 16
        %s495 = scalar_lea.vmem [#allocation7], %s494
        %s496 = smul.u32 2, %s30
        %p497 = scmp.lt.s32.totalorder %s496, 3
        %s498 = scalar_select %p497, %s496, 3
        %s499 = smul.addr %s498, 8
        %s500 = scalar_lea.vmem %s0, %s499
        %s501 = smul.u32 2, %s30
        %s502 = smul.u32 2, %s30
        %v503 = vld [vmem:[%s500] sm:$0xff]
        %v504 = vld [vmem:[%s500 + $0x8] sm:$0xff]
        %v505 = vld [vmem:[%s1] sm:$0xff]
        %v506 = vld [vmem:[%s1 + $0x8] sm:$0xff]
        %v507 = vld [vmem:[%s1 + $0x10] sm:$0xff]
        %v508 = vld [vmem:[%s1 + $0x18] sm:$0xff]
        %v509 = vld [vmem:[%s2] sm:$0x1]
        %v511 = vperm.slane %v509, 0
        %vm513 = vcmask 261120
        %v515 = vsel %vm513, %v503, 0
        %v518 = vsel %vm513, %v504, 0
        %520 = vmatpush.msra.mxu0 0.0
        %521 = vmatpush.msra.mxu0 0.0
        %522 = vmatpush.msra.mxu0 0.0
        %523 = vmatpush.msra.mxu0 0.0
        %524 = vmatpush.msra.mxu0 0.0
        %525 = vmatpush.msra.mxu0 0.0
        %526 = vmatpush.msra.mxu0 0.0
        %527 = vmatpush.msra.mxu0 0.0
        %528 = vmatpush.msra.mxu0 0.0
        %529 = vmatpush.msra.mxu0 0.0
        %530 = vmatpush.msra.mxu0 0.0
        %531 = vmatpush.msra.mxu0 0.0
        %532 = vmatpush.msra.mxu0 %v508
        %533 = vmatpush.msra.mxu0 %v507
        %534 = vmatpush.msra.mxu0 %v506
        %535 = vmatpush.msra.mxu0 %v505
        %536 = vmatmul.f32.gmra.mxu0 %v515
        %v537 = vpop.f32.mrf.mxu0
        %v538 = vadd.f32 %v511, %v537
        %539 = vmatmul.f32.gmra.mxu0 %v518
        %v540 = vpop.f32.mrf.mxu0
        %v541 = vadd.f32 %v511, %v540
        %542 = vdwg.mxu0
        %v543 = vlaneseq
        %v544 = vshrl.u32 %v543, 7
        %v545 = vlaneseq
        %v546 = vand.u32 %v545, 127
        %vm547 = vcmp.eq.s32.totalorder %v544, %v546
        %549 = vrot.lane.b32.xlu0 %v538, 96
        %v550 = vpop.permute.xlu0 %549
        %vm551 = vcmask 64512
        %v552 = vsel %vm551, %v538, 0
        %v554 = vsel %vm551, %v550, 0
        %556 = vmatpush.xpose.msra.mxu0 0.0
        %557 = vmatpush.xpose.msra.mxu0 0.0
        %558 = vmatpush.xpose.msra.mxu0 0.0
        %559 = vmatpush.xpose.msra.mxu0 0.0
        %560 = vmatpush.xpose.msra.mxu0 0.0
        %561 = vmatpush.xpose.msra.mxu0 0.0
        %562 = vmatpush.xpose.msra.mxu0 0.0
        %563 = vmatpush.xpose.msra.mxu0 0.0
        %564 = vmatpush.xpose.msra.mxu0 0.0
        %565 = vmatpush.xpose.msra.mxu0 0.0
        %566 = vmatpush.xpose.msra.mxu0 0.0
        %567 = vmatpush.xpose.msra.mxu0 0.0
        %568 = vmatpush.xpose.msra.mxu0 0.0
        %569 = vmatpush.xpose.msra.mxu0 0.0
        %570 = vmatpush.xpose.msra.mxu0 0.0
        %571 = vmatpush.xpose.msra.mxu0 %v554
        %572 = vmatmul.f32.gmra.mxu0 %v552
        %v573 = vpop.f32.mrf.mxu0
        %v574 = vadd.f32 0.0, %v573
        %575 = vdwg.mxu0
        %v576 = vsel %vm547, -1e+30, %v574
        %v577 = vsel %vm551, %v576, -inf
        %578 = vmax.xlane.f32.xlu0 %v577
        %v579 = vpop.xlane.xlu0 %578
        %v580 = vsub.f32 %v576, %v579
        %v581 = vmul.f32 %v580, 1.442695
        %v582 = vpow.pop %v581
        %v583 = vsel %vm551, %v582, 0.0
        %584 = vadd.xlane.f32.xlu0 %v583
        %v585 = vpop.xlane.xlu0 %584
        %v586 = vrcp.pop %v585
        %v587 = vmul.f32 %v582, %v586
        %588 = vrot.lane.b32.xlu0 %v538, 64
        %v589 = vpop.permute.xlu0 %588
        %591 = vxpose.xlu0.b32.start [1/16] %v589, 128
        %592 = vxpose.xlu0.b32.cont [2/16] 0.0, 128
        %593 = vxpose.xlu0.b32.cont [3/16] 0.0, 128
        %594 = vxpose.xlu0.b32.cont [4/16] 0.0, 128
        %595 = vxpose.xlu0.b32.cont [5/16] 0.0, 128
        %596 = vxpose.xlu0.b32.cont [6/16] 0.0, 128
        %597 = vxpose.xlu0.b32.cont [7/16] 0.0, 128
        %598 = vxpose.xlu0.b32.cont [8/16] 0.0, 128
        %599 = vxpose.xlu0.b32.cont [9/16] 0.0, 128
        %600 = vxpose.xlu0.b32.cont [10/16] 0.0, 128
        %601 = vxpose.xlu0.b32.cont [11/16] 0.0, 128
        %602 = vxpose.xlu0.b32.cont [12/16] 0.0, 128
        %603 = vxpose.xlu0.b32.cont [13/16] 0.0, 128
        %604 = vxpose.xlu0.b32.cont [14/16] 0.0, 128
        %605 = vxpose.xlu0.b32.cont [15/16] 0.0, 128
        %606 = vxpose.xlu0.b32.end [16/16] 0.0, 128
        %v607 = vpop.trf.xlu0
        %v608 = vpop.trf.xlu0
        %v609 = vpop.trf.xlu0
        %v610 = vpop.trf.xlu0
        %v611 = vpop.trf.xlu0
        %v612 = vpop.trf.xlu0
        %v613 = vpop.trf.xlu0
        %v614 = vpop.trf.xlu0
        %v615 = vpop.trf.xlu0
        %v616 = vpop.trf.xlu0
        %v617 = vpop.trf.xlu0
        %v618 = vpop.trf.xlu0
        %v619 = vpop.trf.xlu0
        %v620 = vpop.trf.xlu0
        %v621 = vpop.trf.xlu0
        %v622 = vpop.trf.xlu0
        %v624 = vsel %vm551, %v607, 0
        %v627 = vsel %vm551, %v587, 0
        %629 = vmatpush.xpose.msra.mxu0 0.0
        %630 = vmatpush.xpose.msra.mxu0 0.0
        %631 = vmatpush.xpose.msra.mxu0 0.0
        %632 = vmatpush.xpose.msra.mxu0 0.0
        %633 = vmatpush.xpose.msra.mxu0 0.0
        %634 = vmatpush.xpose.msra.mxu0 0.0
        %635 = vmatpush.xpose.msra.mxu0 0.0
        %636 = vmatpush.xpose.msra.mxu0 0.0
        %637 = vmatpush.xpose.msra.mxu0 0.0
        %638 = vmatpush.xpose.msra.mxu0 0.0
        %639 = vmatpush.xpose.msra.mxu0 0.0
        %640 = vmatpush.xpose.msra.mxu0 0.0
        %641 = vmatpush.xpose.msra.mxu0 0.0
        %642 = vmatpush.xpose.msra.mxu0 0.0
        %643 = vmatpush.xpose.msra.mxu0 0.0
        %644 = vmatpush.xpose.msra.mxu0 %v627
        %645 = vmatmul.f32.gmra.mxu0 %v624
        %v646 = vpop.f32.mrf.mxu0
        %v647 = vadd.f32 0.0, %v646
        %648 = vdwg.mxu0
        %649 = vrot.lane.b32.xlu0 %v538, 120
        %v650 = vpop.permute.xlu0 %649
        %651 = vrot.lane.b32.xlu0 %v538, 88
        %v652 = vpop.permute.xlu0 %651
        %v653 = vsel %vm551, %v650, 0
        %v655 = vsel %vm551, %v652, 0
        %657 = vmatpush.xpose.msra.mxu0 0.0
        %658 = vmatpush.xpose.msra.mxu0 0.0
        %659 = vmatpush.xpose.msra.mxu0 0.0
        %660 = vmatpush.xpose.msra.mxu0 0.0
        %661 = vmatpush.xpose.msra.mxu0 0.0
        %662 = vmatpush.xpose.msra.mxu0 0.0
        %663 = vmatpush.xpose.msra.mxu0 0.0
        %664 = vmatpush.xpose.msra.mxu0 0.0
        %665 = vmatpush.xpose.msra.mxu0 0.0
        %666 = vmatpush.xpose.msra.mxu0 0.0
        %667 = vmatpush.xpose.msra.mxu0 0.0
        %668 = vmatpush.xpose.msra.mxu0 0.0
        %669 = vmatpush.xpose.msra.mxu0 0.0
        %670 = vmatpush.xpose.msra.mxu0 0.0
        %671 = vmatpush.xpose.msra.mxu0 0.0
        %672 = vmatpush.xpose.msra.mxu0 %v655
        %673 = vmatmul.f32.gmra.mxu0 %v653
        %v674 = vpop.f32.mrf.mxu0
        %v675 = vadd.f32 0.0, %v674
        %676 = vdwg.mxu0
        %v677 = vsel %vm547, -1e+30, %v675
        %v678 = vsel %vm551, %v677, -inf
        %679 = vmax.xlane.f32.xlu0 %v678
        %v680 = vpop.xlane.xlu0 %679
        %v681 = vsub.f32 %v677, %v680
        %v682 = vmul.f32 %v681, 1.442695
        %v683 = vpow.pop %v682
        %v684 = vsel %vm551, %v683, 0.0
        %685 = vadd.xlane.f32.xlu0 %v684
        %v686 = vpop.xlane.xlu0 %685
        %v687 = vrcp.pop %v686
        %v688 = vmul.f32 %v683, %v687
        %689 = vrot.lane.b32.xlu0 %v538, 56
        %v690 = vpop.permute.xlu0 %689
        %692 = vxpose.xlu0.b32.start [1/16] %v690, 128
        %693 = vxpose.xlu0.b32.cont [2/16] 0.0, 128
        %694 = vxpose.xlu0.b32.cont [3/16] 0.0, 128
        %695 = vxpose.xlu0.b32.cont [4/16] 0.0, 128
        %696 = vxpose.xlu0.b32.cont [5/16] 0.0, 128
        %697 = vxpose.xlu0.b32.cont [6/16] 0.0, 128
        %698 = vxpose.xlu0.b32.cont [7/16] 0.0, 128
        %699 = vxpose.xlu0.b32.cont [8/16] 0.0, 128
        %700 = vxpose.xlu0.b32.cont [9/16] 0.0, 128
        %701 = vxpose.xlu0.b32.cont [10/16] 0.0, 128
        %702 = vxpose.xlu0.b32.cont [11/16] 0.0, 128
        %703 = vxpose.xlu0.b32.cont [12/16] 0.0, 128
        %704 = vxpose.xlu0.b32.cont [13/16] 0.0, 128
        %705 = vxpose.xlu0.b32.cont [14/16] 0.0, 128
        %706 = vxpose.xlu0.b32.cont [15/16] 0.0, 128
        %707 = vxpose.xlu0.b32.end [16/16] 0.0, 128
        %v708 = vpop.trf.xlu0
        %v709 = vpop.trf.xlu0
        %v710 = vpop.trf.xlu0
        %v711 = vpop.trf.xlu0
        %v712 = vpop.trf.xlu0
        %v713 = vpop.trf.xlu0
        %v714 = vpop.trf.xlu0
        %v715 = vpop.trf.xlu0
        %v716 = vpop.trf.xlu0
        %v717 = vpop.trf.xlu0
        %v718 = vpop.trf.xlu0
        %v719 = vpop.trf.xlu0
        %v720 = vpop.trf.xlu0
        %v721 = vpop.trf.xlu0
        %v722 = vpop.trf.xlu0
        %v723 = vpop.trf.xlu0
        %v725 = vsel %vm551, %v708, 0
        %v728 = vsel %vm551, %v688, 0
        %730 = vmatpush.xpose.msra.mxu0 0.0
        %731 = vmatpush.xpose.msra.mxu0 0.0
        %732 = vmatpush.xpose.msra.mxu0 0.0
        %733 = vmatpush.xpose.msra.mxu0 0.0
        %734 = vmatpush.xpose.msra.mxu0 0.0
        %735 = vmatpush.xpose.msra.mxu0 0.0
        %736 = vmatpush.xpose.msra.mxu0 0.0
        %737 = vmatpush.xpose.msra.mxu0 0.0
        %738 = vmatpush.xpose.msra.mxu0 0.0
        %739 = vmatpush.xpose.msra.mxu0 0.0
        %740 = vmatpush.xpose.msra.mxu0 0.0
        %741 = vmatpush.xpose.msra.mxu0 0.0
        %742 = vmatpush.xpose.msra.mxu0 0.0
        %743 = vmatpush.xpose.msra.mxu0 0.0
        %744 = vmatpush.xpose.msra.mxu0 0.0
        %745 = vmatpush.xpose.msra.mxu0 %v728
        %746 = vmatmul.f32.gmra.mxu0 %v725
        %v747 = vpop.f32.mrf.mxu0
        %v748 = vadd.f32 0.0, %v747
        %749 = vdwg.mxu0
        %750 = vrot.lane.b32.xlu0 %v538, 112
        %v751 = vpop.permute.xlu0 %750
        %752 = vrot.lane.b32.xlu0 %v538, 80
        %v753 = vpop.permute.xlu0 %752
        %v754 = vsel %vm551, %v751, 0
        %v756 = vsel %vm551, %v753, 0
        %758 = vmatpush.xpose.msra.mxu0 0.0
        %759 = vmatpush.xpose.msra.mxu0 0.0
        %760 = vmatpush.xpose.msra.mxu0 0.0
        %761 = vmatpush.xpose.msra.mxu0 0.0
        %762 = vmatpush.xpose.msra.mxu0 0.0
        %763 = vmatpush.xpose.msra.mxu0 0.0
        %764 = vmatpush.xpose.msra.mxu0 0.0
        %765 = vmatpush.xpose.msra.mxu0 0.0
        %766 = vmatpush.xpose.msra.mxu0 0.0
        %767 = vmatpush.xpose.msra.mxu0 0.0
        %768 = vmatpush.xpose.msra.mxu0 0.0
        %769 = vmatpush.xpose.msra.mxu0 0.0
        %770 = vmatpush.xpose.msra.mxu0 0.0
        %771 = vmatpush.xpose.msra.mxu0 0.0
        %772 = vmatpush.xpose.msra.mxu0 0.0
        %773 = vmatpush.xpose.msra.mxu0 %v756
        %774 = vmatmul.f32.gmra.mxu0 %v754
        %v775 = vpop.f32.mrf.mxu0
        %v776 = vadd.f32 0.0, %v775
        %777 = vdwg.mxu0
        %v778 = vsel %vm547, -1e+30, %v776
        %v779 = vsel %vm551, %v778, -inf
        %780 = vmax.xlane.f32.xlu0 %v779
        %v781 = vpop.xlane.xlu0 %780
        %v782 = vsub.f32 %v778, %v781
        %v783 = vmul.f32 %v782, 1.442695
        %v784 = vpow.pop %v783
        %v785 = vsel %vm551, %v784, 0.0
        %786 = vadd.xlane.f32.xlu0 %v785
        %v787 = vpop.xlane.xlu0 %786
        %v788 = vrcp.pop %v787
        %v789 = vmul.f32 %v784, %v788
        %790 = vrot.lane.b32.xlu0 %v538, 48
        %v791 = vpop.permute.xlu0 %790
        %793 = vxpose.xlu0.b32.start [1/16] %v791, 128
        %794 = vxpose.xlu0.b32.cont [2/16] 0.0, 128
        %795 = vxpose.xlu0.b32.cont [3/16] 0.0, 128
        %796 = vxpose.xlu0.b32.cont [4/16] 0.0, 128
        %797 = vxpose.xlu0.b32.cont [5/16] 0.0, 128
        %798 = vxpose.xlu0.b32.cont [6/16] 0.0, 128
        %799 = vxpose.xlu0.b32.cont [7/16] 0.0, 128
        %800 = vxpose.xlu0.b32.cont [8/16] 0.0, 128
        %801 = vxpose.xlu0.b32.cont [9/16] 0.0, 128
        %802 = vxpose.xlu0.b32.cont [10/16] 0.0, 128
        %803 = vxpose.xlu0.b32.cont [11/16] 0.0, 128
        %804 = vxpose.xlu0.b32.cont [12/16] 0.0, 128
        %805 = vxpose.xlu0.b32.cont [13/16] 0.0, 128
        %806 = vxpose.xlu0.b32.cont [14/16] 0.0, 128
        %807 = vxpose.xlu0.b32.cont [15/16] 0.0, 128
        %808 = vxpose.xlu0.b32.end [16/16] 0.0, 128
        %v809 = vpop.trf.xlu0
        %v810 = vpop.trf.xlu0
        %v811 = vpop.trf.xlu0
        %v812 = vpop.trf.xlu0
        %v813 = vpop.trf.xlu0
        %v814 = vpop.trf.xlu0
        %v815 = vpop.trf.xlu0
        %v816 = vpop.trf.xlu0
        %v817 = vpop.trf.xlu0
        %v818 = vpop.trf.xlu0
        %v819 = vpop.trf.xlu0
        %v820 = vpop.trf.xlu0
        %v821 = vpop.trf.xlu0
        %v822 = vpop.trf.xlu0
        %v823 = vpop.trf.xlu0
        %v824 = vpop.trf.xlu0
        %v826 = vsel %vm551, %v809, 0
        %v829 = vsel %vm551, %v789, 0
        %831 = vmatpush.xpose.msra.mxu0 0.0
        %832 = vmatpush.xpose.msra.mxu0 0.0
        %833 = vmatpush.xpose.msra.mxu0 0.0
        %834 = vmatpush.xpose.msra.mxu0 0.0
        %835 = vmatpush.xpose.msra.mxu0 0.0
        %836 = vmatpush.xpose.msra.mxu0 0.0
        %837 = vmatpush.xpose.msra.mxu0 0.0
        %838 = vmatpush.xpose.msra.mxu0 0.0
        %839 = vmatpush.xpose.msra.mxu0 0.0
        %840 = vmatpush.xpose.msra.mxu0 0.0
        %841 = vmatpush.xpose.msra.mxu0 0.0
        %842 = vmatpush.xpose.msra.mxu0 0.0
        %843 = vmatpush.xpose.msra.mxu0 0.0
        %844 = vmatpush.xpose.msra.mxu0 0.0
        %845 = vmatpush.xpose.msra.mxu0 0.0
        %846 = vmatpush.xpose.msra.mxu0 %v829
        %847 = vmatmul.f32.gmra.mxu0 %v826
        %v848 = vpop.f32.mrf.mxu0
        %v849 = vadd.f32 0.0, %v848
        %850 = vdwg.mxu0
        %851 = vrot.lane.b32.xlu0 %v538, 104
        %v852 = vpop.permute.xlu0 %851
        %853 = vrot.lane.b32.xlu0 %v538, 72
        %v854 = vpop.permute.xlu0 %853
        %v855 = vsel %vm551, %v852, 0
        %v857 = vsel %vm551, %v854, 0
        %859 = vmatpush.xpose.msra.mxu0 0.0
        %860 = vmatpush.xpose.msra.mxu0 0.0
        %861 = vmatpush.xpose.msra.mxu0 0.0
        %862 = vmatpush.xpose.msra.mxu0 0.0
        %863 = vmatpush.xpose.msra.mxu0 0.0
        %864 = vmatpush.xpose.msra.mxu0 0.0
        %865 = vmatpush.xpose.msra.mxu0 0.0
        %866 = vmatpush.xpose.msra.mxu0 0.0
        %867 = vmatpush.xpose.msra.mxu0 0.0
        %868 = vmatpush.xpose.msra.mxu0 0.0
        %869 = vmatpush.xpose.msra.mxu0 0.0
        %870 = vmatpush.xpose.msra.mxu0 0.0
        %871 = vmatpush.xpose.msra.mxu0 0.0
        %872 = vmatpush.xpose.msra.mxu0 0.0
        %873 = vmatpush.xpose.msra.mxu0 0.0
        %874 = vmatpush.xpose.msra.mxu0 %v857
        %875 = vmatmul.f32.gmra.mxu0 %v855
        %v876 = vpop.f32.mrf.mxu0
        %v877 = vadd.f32 0.0, %v876
        %878 = vdwg.mxu0
        %v879 = vsel %vm547, -1e+30, %v877
        %v880 = vsel %vm551, %v879, -inf
        %881 = vmax.xlane.f32.xlu0 %v880
        %v882 = vpop.xlane.xlu0 %881
        %v883 = vsub.f32 %v879, %v882
        %v884 = vmul.f32 %v883, 1.442695
        %v885 = vpow.pop %v884
        %v886 = vsel %vm551, %v885, 0.0
        %887 = vadd.xlane.f32.xlu0 %v886
        %v888 = vpop.xlane.xlu0 %887
        %v889 = vrcp.pop %v888
        %v890 = vmul.f32 %v885, %v889
        %891 = vrot.lane.b32.xlu0 %v538, 40
        %v892 = vpop.permute.xlu0 %891
        %894 = vxpose.xlu0.b32.start [1/16] %v892, 128
        %895 = vxpose.xlu0.b32.cont [2/16] 0.0, 128
        %896 = vxpose.xlu0.b32.cont [3/16] 0.0, 128
        %897 = vxpose.xlu0.b32.cont [4/16] 0.0, 128
        %898 = vxpose.xlu0.b32.cont [5/16] 0.0, 128
        %899 = vxpose.xlu0.b32.cont [6/16] 0.0, 128
        %900 = vxpose.xlu0.b32.cont [7/16] 0.0, 128
        %901 = vxpose.xlu0.b32.cont [8/16] 0.0, 128
        %902 = vxpose.xlu0.b32.cont [9/16] 0.0, 128
        %903 = vxpose.xlu0.b32.cont [10/16] 0.0, 128
        %904 = vxpose.xlu0.b32.cont [11/16] 0.0, 128
        %905 = vxpose.xlu0.b32.cont [12/16] 0.0, 128
        %906 = vxpose.xlu0.b32.cont [13/16] 0.0, 128
        %907 = vxpose.xlu0.b32.cont [14/16] 0.0, 128
        %908 = vxpose.xlu0.b32.cont [15/16] 0.0, 128
        %909 = vxpose.xlu0.b32.end [16/16] 0.0, 128
        %v910 = vpop.trf.xlu0
        %v911 = vpop.trf.xlu0
        %v912 = vpop.trf.xlu0
        %v913 = vpop.trf.xlu0
        %v914 = vpop.trf.xlu0
        %v915 = vpop.trf.xlu0
        %v916 = vpop.trf.xlu0
        %v917 = vpop.trf.xlu0
        %v918 = vpop.trf.xlu0
        %v919 = vpop.trf.xlu0
        %v920 = vpop.trf.xlu0
        %v921 = vpop.trf.xlu0
        %v922 = vpop.trf.xlu0
        %v923 = vpop.trf.xlu0
        %v924 = vpop.trf.xlu0
        %v925 = vpop.trf.xlu0
        %v927 = vsel %vm551, %v910, 0
        %v930 = vsel %vm551, %v890, 0
        %932 = vmatpush.xpose.msra.mxu0 0.0
        %933 = vmatpush.xpose.msra.mxu0 0.0
        %934 = vmatpush.xpose.msra.mxu0 0.0
        %935 = vmatpush.xpose.msra.mxu0 0.0
        %936 = vmatpush.xpose.msra.mxu0 0.0
        %937 = vmatpush.xpose.msra.mxu0 0.0
        %938 = vmatpush.xpose.msra.mxu0 0.0
        %939 = vmatpush.xpose.msra.mxu0 0.0
        %940 = vmatpush.xpose.msra.mxu0 0.0
        %941 = vmatpush.xpose.msra.mxu0 0.0
        %942 = vmatpush.xpose.msra.mxu0 0.0
        %943 = vmatpush.xpose.msra.mxu0 0.0
        %944 = vmatpush.xpose.msra.mxu0 0.0
        %945 = vmatpush.xpose.msra.mxu0 0.0
        %946 = vmatpush.xpose.msra.mxu0 0.0
        %947 = vmatpush.xpose.msra.mxu0 %v930
        %948 = vmatmul.f32.gmra.mxu0 %v927
        %v949 = vpop.f32.mrf.mxu0
        %v950 = vadd.f32 0.0, %v949
        %951 = vdwg.mxu0
        %953 = vrot.lane.b32.xlu0 %v541, 96
        %v954 = vpop.permute.xlu0 %953
        %v955 = vsel %vm551, %v541, 0
        %v957 = vsel %vm551, %v954, 0
        %959 = vmatpush.xpose.msra.mxu0 0.0
        %960 = vmatpush.xpose.msra.mxu0 0.0
        %961 = vmatpush.xpose.msra.mxu0 0.0
        %962 = vmatpush.xpose.msra.mxu0 0.0
        %963 = vmatpush.xpose.msra.mxu0 0.0
        %964 = vmatpush.xpose.msra.mxu0 0.0
        %965 = vmatpush.xpose.msra.mxu0 0.0
        %966 = vmatpush.xpose.msra.mxu0 0.0
        %967 = vmatpush.xpose.msra.mxu0 0.0
        %968 = vmatpush.xpose.msra.mxu0 0.0
        %969 = vmatpush.xpose.msra.mxu0 0.0
        %970 = vmatpush.xpose.msra.mxu0 0.0
        %971 = vmatpush.xpose.msra.mxu0 0.0
        %972 = vmatpush.xpose.msra.mxu0 0.0
        %973 = vmatpush.xpose.msra.mxu0 0.0
        %974 = vmatpush.xpose.msra.mxu0 %v957
        %975 = vmatmul.f32.gmra.mxu0 %v955
        %v976 = vpop.f32.mrf.mxu0
        %v977 = vadd.f32 0.0, %v976
        %978 = vdwg.mxu0
        %v979 = vsel %vm547, -1e+30, %v977
        %v980 = vsel %vm551, %v979, -inf
        %981 = vmax.xlane.f32.xlu0 %v980
        %v982 = vpop.xlane.xlu0 %981
        %v983 = vsub.f32 %v979, %v982
        %v984 = vmul.f32 %v983, 1.442695
        %v985 = vpow.pop %v984
        %v986 = vsel %vm551, %v985, 0.0
        %987 = vadd.xlane.f32.xlu0 %v986
        %v988 = vpop.xlane.xlu0 %987
        %v989 = vrcp.pop %v988
        %v990 = vmul.f32 %v985, %v989
        %991 = vrot.lane.b32.xlu0 %v541, 64
        %v992 = vpop.permute.xlu0 %991
        %994 = vxpose.xlu0.b32.start [1/16] %v992, 128
        %995 = vxpose.xlu0.b32.cont [2/16] 0.0, 128
        %996 = vxpose.xlu0.b32.cont [3/16] 0.0, 128
        %997 = vxpose.xlu0.b32.cont [4/16] 0.0, 128
        %998 = vxpose.xlu0.b32.cont [5/16] 0.0, 128
        %999 = vxpose.xlu0.b32.cont [6/16] 0.0, 128
        %1000 = vxpose.xlu0.b32.cont [7/16] 0.0, 128
        %1001 = vxpose.xlu0.b32.cont [8/16] 0.0, 128
        %1002 = vxpose.xlu0.b32.cont [9/16] 0.0, 128
        %1003 = vxpose.xlu0.b32.cont [10/16] 0.0, 128
        %1004 = vxpose.xlu0.b32.cont [11/16] 0.0, 128
        %1005 = vxpose.xlu0.b32.cont [12/16] 0.0, 128
        %1006 = vxpose.xlu0.b32.cont [13/16] 0.0, 128
        %1007 = vxpose.xlu0.b32.cont [14/16] 0.0, 128
        %1008 = vxpose.xlu0.b32.cont [15/16] 0.0, 128
        %1009 = vxpose.xlu0.b32.end [16/16] 0.0, 128
        %v1010 = vpop.trf.xlu0
        %v1011 = vpop.trf.xlu0
        %v1012 = vpop.trf.xlu0
        %v1013 = vpop.trf.xlu0
        %v1014 = vpop.trf.xlu0
        %v1015 = vpop.trf.xlu0
        %v1016 = vpop.trf.xlu0
        %v1017 = vpop.trf.xlu0
        %v1018 = vpop.trf.xlu0
        %v1019 = vpop.trf.xlu0
        %v1020 = vpop.trf.xlu0
        %v1021 = vpop.trf.xlu0
        %v1022 = vpop.trf.xlu0
        %v1023 = vpop.trf.xlu0
        %v1024 = vpop.trf.xlu0
        %v1025 = vpop.trf.xlu0
        %v1027 = vsel %vm551, %v1010, 0
        %v1030 = vsel %vm551, %v990, 0
        %1032 = vmatpush.xpose.msra.mxu0 0.0
        %1033 = vmatpush.xpose.msra.mxu0 0.0
        %1034 = vmatpush.xpose.msra.mxu0 0.0
        %1035 = vmatpush.xpose.msra.mxu0 0.0
        %1036 = vmatpush.xpose.msra.mxu0 0.0
        %1037 = vmatpush.xpose.msra.mxu0 0.0
        %1038 = vmatpush.xpose.msra.mxu0 0.0
        %1039 = vmatpush.xpose.msra.mxu0 0.0
        %1040 = vmatpush.xpose.msra.mxu0 0.0
        %1041 = vmatpush.xpose.msra.mxu0 0.0
        %1042 = vmatpush.xpose.msra.mxu0 0.0
        %1043 = vmatpush.xpose.msra.mxu0 0.0
        %1044 = vmatpush.xpose.msra.mxu0 0.0
        %1045 = vmatpush.xpose.msra.mxu0 0.0
        %1046 = vmatpush.xpose.msra.mxu0 0.0
        %1047 = vmatpush.xpose.msra.mxu0 %v1030
        %1048 = vmatmul.f32.gmra.mxu0 %v1027
        %v1049 = vpop.f32.mrf.mxu0
        %v1050 = vadd.f32 0.0, %v1049
        %1051 = vdwg.mxu0
        %1052 = vrot.lane.b32.xlu0 %v541, 120
        %v1053 = vpop.permute.xlu0 %1052
        %1054 = vrot.lane.b32.xlu0 %v541, 88
        %v1055 = vpop.permute.xlu0 %1054
        %v1056 = vsel %vm551, %v1053, 0
        %v1058 = vsel %vm551, %v1055, 0
        %1060 = vmatpush.xpose.msra.mxu0 0.0
        %1061 = vmatpush.xpose.msra.mxu0 0.0
        %1062 = vmatpush.xpose.msra.mxu0 0.0
        %1063 = vmatpush.xpose.msra.mxu0 0.0
        %1064 = vmatpush.xpose.msra.mxu0 0.0
        %1065 = vmatpush.xpose.msra.mxu0 0.0
        %1066 = vmatpush.xpose.msra.mxu0 0.0
        %1067 = vmatpush.xpose.msra.mxu0 0.0
        %1068 = vmatpush.xpose.msra.mxu0 0.0
        %1069 = vmatpush.xpose.msra.mxu0 0.0
        %1070 = vmatpush.xpose.msra.mxu0 0.0
        %1071 = vmatpush.xpose.msra.mxu0 0.0
        %1072 = vmatpush.xpose.msra.mxu0 0.0
        %1073 = vmatpush.xpose.msra.mxu0 0.0
        %1074 = vmatpush.xpose.msra.mxu0 0.0
        %1075 = vmatpush.xpose.msra.mxu0 %v1058
        %1076 = vmatmul.f32.gmra.mxu0 %v1056
        %v1077 = vpop.f32.mrf.mxu0
        %v1078 = vadd.f32 0.0, %v1077
        %1079 = vdwg.mxu0
        %v1080 = vsel %vm547, -1e+30, %v1078
        %v1081 = vsel %vm551, %v1080, -inf
        %1082 = vmax.xlane.f32.xlu0 %v1081
        %v1083 = vpop.xlane.xlu0 %1082
        %v1084 = vsub.f32 %v1080, %v1083
        %v1085 = vmul.f32 %v1084, 1.442695
        %v1086 = vpow.pop %v1085
        %v1087 = vsel %vm551, %v1086, 0.0
        %1088 = vadd.xlane.f32.xlu0 %v1087
        %v1089 = vpop.xlane.xlu0 %1088
        %v1090 = vrcp.pop %v1089
        %v1091 = vmul.f32 %v1086, %v1090
        %1092 = vrot.lane.b32.xlu0 %v541, 56
        %v1093 = vpop.permute.xlu0 %1092
        %1095 = vxpose.xlu0.b32.start [1/16] %v1093, 128
        %1096 = vxpose.xlu0.b32.cont [2/16] 0.0, 128
        %1097 = vxpose.xlu0.b32.cont [3/16] 0.0, 128
        %1098 = vxpose.xlu0.b32.cont [4/16] 0.0, 128
        %1099 = vxpose.xlu0.b32.cont [5/16] 0.0, 128
        %1100 = vxpose.xlu0.b32.cont [6/16] 0.0, 128
        %1101 = vxpose.xlu0.b32.cont [7/16] 0.0, 128
        %1102 = vxpose.xlu0.b32.cont [8/16] 0.0, 128
        %1103 = vxpose.xlu0.b32.cont [9/16] 0.0, 128
        %1104 = vxpose.xlu0.b32.cont [10/16] 0.0, 128
        %1105 = vxpose.xlu0.b32.cont [11/16] 0.0, 128
        %1106 = vxpose.xlu0.b32.cont [12/16] 0.0, 128
        %1107 = vxpose.xlu0.b32.cont [13/16] 0.0, 128
        %1108 = vxpose.xlu0.b32.cont [14/16] 0.0, 128
        %1109 = vxpose.xlu0.b32.cont [15/16] 0.0, 128
        %1110 = vxpose.xlu0.b32.end [16/16] 0.0, 128
        %v1111 = vpop.trf.xlu0
        %v1112 = vpop.trf.xlu0
        %v1113 = vpop.trf.xlu0
        %v1114 = vpop.trf.xlu0
        %v1115 = vpop.trf.xlu0
        %v1116 = vpop.trf.xlu0
        %v1117 = vpop.trf.xlu0
        %v1118 = vpop.trf.xlu0
        %v1119 = vpop.trf.xlu0
        %v1120 = vpop.trf.xlu0
        %v1121 = vpop.trf.xlu0
        %v1122 = vpop.trf.xlu0
        %v1123 = vpop.trf.xlu0
        %v1124 = vpop.trf.xlu0
        %v1125 = vpop.trf.xlu0
        %v1126 = vpop.trf.xlu0
        %v1128 = vsel %vm551, %v1111, 0
        %v1131 = vsel %vm551, %v1091, 0
        %1133 = vmatpush.xpose.msra.mxu0 0.0
        %1134 = vmatpush.xpose.msra.mxu0 0.0
        %1135 = vmatpush.xpose.msra.mxu0 0.0
        %1136 = vmatpush.xpose.msra.mxu0 0.0
        %1137 = vmatpush.xpose.msra.mxu0 0.0
        %1138 = vmatpush.xpose.msra.mxu0 0.0
        %1139 = vmatpush.xpose.msra.mxu0 0.0
        %1140 = vmatpush.xpose.msra.mxu0 0.0
        %1141 = vmatpush.xpose.msra.mxu0 0.0
        %1142 = vmatpush.xpose.msra.mxu0 0.0
        %1143 = vmatpush.xpose.msra.mxu0 0.0
        %1144 = vmatpush.xpose.msra.mxu0 0.0
        %1145 = vmatpush.xpose.msra.mxu0 0.0
        %1146 = vmatpush.xpose.msra.mxu0 0.0
        %1147 = vmatpush.xpose.msra.mxu0 0.0
        %1148 = vmatpush.xpose.msra.mxu0 %v1131
        %1149 = vmatmul.f32.gmra.mxu0 %v1128
        %v1150 = vpop.f32.mrf.mxu0
        %v1151 = vadd.f32 0.0, %v1150
        %1152 = vdwg.mxu0
        %1153 = vrot.lane.b32.xlu0 %v541, 112
        %v1154 = vpop.permute.xlu0 %1153
        %1155 = vrot.lane.b32.xlu0 %v541, 80
        %v1156 = vpop.permute.xlu0 %1155
        %v1157 = vsel %vm551, %v1154, 0
        %v1159 = vsel %vm551, %v1156, 0
        %1161 = vmatpush.xpose.msra.mxu0 0.0
        %1162 = vmatpush.xpose.msra.mxu0 0.0
        %1163 = vmatpush.xpose.msra.mxu0 0.0
        %1164 = vmatpush.xpose.msra.mxu0 0.0
        %1165 = vmatpush.xpose.msra.mxu0 0.0
        %1166 = vmatpush.xpose.msra.mxu0 0.0
        %1167 = vmatpush.xpose.msra.mxu0 0.0
        %1168 = vmatpush.xpose.msra.mxu0 0.0
        %1169 = vmatpush.xpose.msra.mxu0 0.0
        %1170 = vmatpush.xpose.msra.mxu0 0.0
        %1171 = vmatpush.xpose.msra.mxu0 0.0
        %1172 = vmatpush.xpose.msra.mxu0 0.0
        %1173 = vmatpush.xpose.msra.mxu0 0.0
        %1174 = vmatpush.xpose.msra.mxu0 0.0
        %1175 = vmatpush.xpose.msra.mxu0 0.0
        %1176 = vmatpush.xpose.msra.mxu0 %v1159
        %1177 = vmatmul.f32.gmra.mxu0 %v1157
        %v1178 = vpop.f32.mrf.mxu0
        %v1179 = vadd.f32 0.0, %v1178
        %1180 = vdwg.mxu0
        %v1181 = vsel %vm547, -1e+30, %v1179
        %v1182 = vsel %vm551, %v1181, -inf
        %1183 = vmax.xlane.f32.xlu0 %v1182
        %v1184 = vpop.xlane.xlu0 %1183
        %v1185 = vsub.f32 %v1181, %v1184
        %v1186 = vmul.f32 %v1185, 1.442695
        %v1187 = vpow.pop %v1186
        %v1188 = vsel %vm551, %v1187, 0.0
        %1189 = vadd.xlane.f32.xlu0 %v1188
        %v1190 = vpop.xlane.xlu0 %1189
        %v1191 = vrcp.pop %v1190
        %v1192 = vmul.f32 %v1187, %v1191
        %1193 = vrot.lane.b32.xlu0 %v541, 48
        %v1194 = vpop.permute.xlu0 %1193
        %1196 = vxpose.xlu0.b32.start [1/16] %v1194, 128
        %1197 = vxpose.xlu0.b32.cont [2/16] 0.0, 128
        %1198 = vxpose.xlu0.b32.cont [3/16] 0.0, 128
        %1199 = vxpose.xlu0.b32.cont [4/16] 0.0, 128
        %1200 = vxpose.xlu0.b32.cont [5/16] 0.0, 128
        %1201 = vxpose.xlu0.b32.cont [6/16] 0.0, 128
        %1202 = vxpose.xlu0.b32.cont [7/16] 0.0, 128
        %1203 = vxpose.xlu0.b32.cont [8/16] 0.0, 128
        %1204 = vxpose.xlu0.b32.cont [9/16] 0.0, 128
        %1205 = vxpose.xlu0.b32.cont [10/16] 0.0, 128
        %1206 = vxpose.xlu0.b32.cont [11/16] 0.0, 128
        %1207 = vxpose.xlu0.b32.cont [12/16] 0.0, 128
        %1208 = vxpose.xlu0.b32.cont [13/16] 0.0, 128
        %1209 = vxpose.xlu0.b32.cont [14/16] 0.0, 128
        %1210 = vxpose.xlu0.b32.cont [15/16] 0.0, 128
        %1211 = vxpose.xlu0.b32.end [16/16] 0.0, 128
        %v1212 = vpop.trf.xlu0
        %v1213 = vpop.trf.xlu0
        %v1214 = vpop.trf.xlu0
        %v1215 = vpop.trf.xlu0
        %v1216 = vpop.trf.xlu0
        %v1217 = vpop.trf.xlu0
        %v1218 = vpop.trf.xlu0
        %v1219 = vpop.trf.xlu0
        %v1220 = vpop.trf.xlu0
        %v1221 = vpop.trf.xlu0
        %v1222 = vpop.trf.xlu0
        %v1223 = vpop.trf.xlu0
        %v1224 = vpop.trf.xlu0
        %v1225 = vpop.trf.xlu0
        %v1226 = vpop.trf.xlu0
        %v1227 = vpop.trf.xlu0
        %v1229 = vsel %vm551, %v1212, 0
        %v1232 = vsel %vm551, %v1192, 0
        %1234 = vmatpush.xpose.msra.mxu0 0.0
        %1235 = vmatpush.xpose.msra.mxu0 0.0
        %1236 = vmatpush.xpose.msra.mxu0 0.0
        %1237 = vmatpush.xpose.msra.mxu0 0.0
        %1238 = vmatpush.xpose.msra.mxu0 0.0
        %1239 = vmatpush.xpose.msra.mxu0 0.0
        %1240 = vmatpush.xpose.msra.mxu0 0.0
        %1241 = vmatpush.xpose.msra.mxu0 0.0
        %1242 = vmatpush.xpose.msra.mxu0 0.0
        %1243 = vmatpush.xpose.msra.mxu0 0.0
        %1244 = vmatpush.xpose.msra.mxu0 0.0
        %1245 = vmatpush.xpose.msra.mxu0 0.0
        %1246 = vmatpush.xpose.msra.mxu0 0.0
        %1247 = vmatpush.xpose.msra.mxu0 0.0
        %1248 = vmatpush.xpose.msra.mxu0 0.0
        %1249 = vmatpush.xpose.msra.mxu0 %v1232
        %1250 = vmatmul.f32.gmra.mxu0 %v1229
        %v1251 = vpop.f32.mrf.mxu0
        %v1252 = vadd.f32 0.0, %v1251
        %1253 = vdwg.mxu0
        %1254 = vrot.lane.b32.xlu0 %v541, 104
        %v1255 = vpop.permute.xlu0 %1254
        %1256 = vrot.lane.b32.xlu0 %v541, 72
        %v1257 = vpop.permute.xlu0 %1256
        %v1258 = vsel %vm551, %v1255, 0
        %v1260 = vsel %vm551, %v1257, 0
        %1262 = vmatpush.xpose.msra.mxu0 0.0
        %1263 = vmatpush.xpose.msra.mxu0 0.0
        %1264 = vmatpush.xpose.msra.mxu0 0.0
        %1265 = vmatpush.xpose.msra.mxu0 0.0
        %1266 = vmatpush.xpose.msra.mxu0 0.0
        %1267 = vmatpush.xpose.msra.mxu0 0.0
        %1268 = vmatpush.xpose.msra.mxu0 0.0
        %1269 = vmatpush.xpose.msra.mxu0 0.0
        %1270 = vmatpush.xpose.msra.mxu0 0.0
        %1271 = vmatpush.xpose.msra.mxu0 0.0
        %1272 = vmatpush.xpose.msra.mxu0 0.0
        %1273 = vmatpush.xpose.msra.mxu0 0.0
        %1274 = vmatpush.xpose.msra.mxu0 0.0
        %1275 = vmatpush.xpose.msra.mxu0 0.0
        %1276 = vmatpush.xpose.msra.mxu0 0.0
        %1277 = vmatpush.xpose.msra.mxu0 %v1260
        %1278 = vmatmul.f32.gmra.mxu0 %v1258
        %v1279 = vpop.f32.mrf.mxu0
        %v1280 = vadd.f32 0.0, %v1279
        %1281 = vdwg.mxu0
        %v1282 = vsel %vm547, -1e+30, %v1280
        %v1283 = vsel %vm551, %v1282, -inf
        %1284 = vmax.xlane.f32.xlu0 %v1283
        %v1285 = vpop.xlane.xlu0 %1284
        %v1286 = vsub.f32 %v1282, %v1285
        %v1287 = vmul.f32 %v1286, 1.442695
        %v1288 = vpow.pop %v1287
        %v1289 = vsel %vm551, %v1288, 0.0
        %1290 = vadd.xlane.f32.xlu0 %v1289
        %v1291 = vpop.xlane.xlu0 %1290
        %v1292 = vrcp.pop %v1291
        %v1293 = vmul.f32 %v1288, %v1292
        %1294 = vrot.lane.b32.xlu0 %v541, 40
        %v1295 = vpop.permute.xlu0 %1294
        %1297 = vxpose.xlu0.b32.start [1/16] %v1295, 128
        %1298 = vxpose.xlu0.b32.cont [2/16] 0.0, 128
        %1299 = vxpose.xlu0.b32.cont [3/16] 0.0, 128
        %1300 = vxpose.xlu0.b32.cont [4/16] 0.0, 128
        %1301 = vxpose.xlu0.b32.cont [5/16] 0.0, 128
        %1302 = vxpose.xlu0.b32.cont [6/16] 0.0, 128
        %1303 = vxpose.xlu0.b32.cont [7/16] 0.0, 128
        %1304 = vxpose.xlu0.b32.cont [8/16] 0.0, 128
        %1305 = vxpose.xlu0.b32.cont [9/16] 0.0, 128
        %1306 = vxpose.xlu0.b32.cont [10/16] 0.0, 128
        %1307 = vxpose.xlu0.b32.cont [11/16] 0.0, 128
        %1308 = vxpose.xlu0.b32.cont [12/16] 0.0, 128
        %1309 = vxpose.xlu0.b32.cont [13/16] 0.0, 128
        %1310 = vxpose.xlu0.b32.cont [14/16] 0.0, 128
        %1311 = vxpose.xlu0.b32.cont [15/16] 0.0, 128
        %1312 = vxpose.xlu0.b32.end [16/16] 0.0, 128
        %v1313 = vpop.trf.xlu0
        %v1314 = vpop.trf.xlu0
        %v1315 = vpop.trf.xlu0
        %v1316 = vpop.trf.xlu0
        %v1317 = vpop.trf.xlu0
        %v1318 = vpop.trf.xlu0
        %v1319 = vpop.trf.xlu0
        %v1320 = vpop.trf.xlu0
        %v1321 = vpop.trf.xlu0
        %v1322 = vpop.trf.xlu0
        %v1323 = vpop.trf.xlu0
        %v1324 = vpop.trf.xlu0
        %v1325 = vpop.trf.xlu0
        %v1326 = vpop.trf.xlu0
        %v1327 = vpop.trf.xlu0
        %v1328 = vpop.trf.xlu0
        %v1330 = vsel %vm551, %v1313, 0
        %v1333 = vsel %vm551, %v1293, 0
        %1335 = vmatpush.xpose.msra.mxu0 0.0
        %1336 = vmatpush.xpose.msra.mxu0 0.0
        %1337 = vmatpush.xpose.msra.mxu0 0.0
        %1338 = vmatpush.xpose.msra.mxu0 0.0
        %1339 = vmatpush.xpose.msra.mxu0 0.0
        %1340 = vmatpush.xpose.msra.mxu0 0.0
        %1341 = vmatpush.xpose.msra.mxu0 0.0
        %1342 = vmatpush.xpose.msra.mxu0 0.0
        %1343 = vmatpush.xpose.msra.mxu0 0.0
        %1344 = vmatpush.xpose.msra.mxu0 0.0
        %1345 = vmatpush.xpose.msra.mxu0 0.0
        %1346 = vmatpush.xpose.msra.mxu0 0.0
        %1347 = vmatpush.xpose.msra.mxu0 0.0
        %1348 = vmatpush.xpose.msra.mxu0 0.0
        %1349 = vmatpush.xpose.msra.mxu0 0.0
        %1350 = vmatpush.xpose.msra.mxu0 %v1333
        %1351 = vmatmul.f32.gmra.mxu0 %v1330
        %v1352 = vpop.f32.mrf.mxu0
        %v1353 = vadd.f32 0.0, %v1352
        %1354 = vdwg.mxu0
        %1359 = vrot.lane.b32.xlu0 %v1050, 8
        %v1360 = vpop.permute.xlu0 %1359
        %1361 = vrot.lane.b32.xlu0 %v1151, 8
        %v1362 = vpop.permute.xlu0 %1361
        %1363 = vrot.lane.b32.xlu0 %v1252, 8
        %v1364 = vpop.permute.xlu0 %1363
        %1365 = vrot.lane.b32.xlu0 %v1353, 8
        %v1366 = vpop.permute.xlu0 %1365
        %v1371 = vsel %vm551, %v647, %v1360
        %v1372 = vsel %vm551, %v748, %v1362
        %v1373 = vsel %vm551, %v849, %v1364
        %v1374 = vsel %vm551, %v950, %v1366
        %v1375 = vld [vmem:[#allocation2] sm:$0xff]
        %v1376 = vld [vmem:[#allocation2 + $0x8] sm:$0xff]
        %v1377 = vld [vmem:[#allocation2 + $0x10] sm:$0xff]
        %v1378 = vld [vmem:[#allocation2 + $0x18] sm:$0xff]
        %v1380 = vsel %vm513, %v1375, 0
        %v1383 = vsel %vm513, %v1376, 0
        %v1386 = vsel %vm513, %v1377, 0
        %v1389 = vsel %vm513, %v1378, 0
        %1391 = vmatpush.msra.mxu0 0.0
        %1392 = vmatpush.msra.mxu0 0.0
        %1393 = vmatpush.msra.mxu0 0.0
        %1394 = vmatpush.msra.mxu0 0.0
        %1395 = vmatpush.msra.mxu0 0.0
        %1396 = vmatpush.msra.mxu0 0.0
        %1397 = vmatpush.msra.mxu0 0.0
        %1398 = vmatpush.msra.mxu0 0.0
        %1399 = vmatpush.msra.mxu0 0.0
        %1400 = vmatpush.msra.mxu0 0.0
        %1401 = vmatpush.msra.mxu0 0.0
        %1402 = vmatpush.msra.mxu0 0.0
        %1403 = vmatpush.msra.mxu0 %v1374
        %1404 = vmatpush.msra.mxu0 %v1373
        %1405 = vmatpush.msra.mxu0 %v1372
        %1406 = vmatpush.msra.mxu0 %v1371
        %1407 = vmatmul.f32.gmra.mxu0 %v1380
        %v1408 = vpop.f32.mrf.mxu0
        %v1409 = vadd.f32 0.0, %v1408
        %1410 = vmatmul.f32.gmra.mxu0 %v1383
        %v1411 = vpop.f32.mrf.mxu0
        %v1412 = vadd.f32 0.0, %v1411
        %1413 = vmatmul.f32.gmra.mxu0 %v1386
        %v1414 = vpop.f32.mrf.mxu0
        %v1415 = vadd.f32 0.0, %v1414
        %1416 = vmatmul.f32.gmra.mxu0 %v1389
        %v1417 = vpop.f32.mrf.mxu0
        %v1418 = vadd.f32 0.0, %v1417
        %1419 = vdwg.mxu0
        %1421 = vrot.lane.b32.xlu0 %v1412, 8
        %v1422 = vpop.permute.xlu0 %1421
        %1425 = vrot.lane.b32.xlu0 %v1415, 16
        %v1426 = vpop.permute.xlu0 %1425
        %1429 = vrot.lane.b32.xlu0 %v1418, 24
        %v1430 = vpop.permute.xlu0 %1429
        %v1432 = vsel %vm551, %v1409, %v1422
        %vm1433 = vcmask 130048
        %v1434 = vsel %vm1433, %v1432, %v1426
        %vm1435 = vcmask 195584
        %v1436 = vsel %vm1435, %v1434, %v1430
        %1438 = vrot.lane.b32.xlu0 %v1409, 120
        %v1439 = vpop.permute.xlu0 %1438
        %1441 = vrot.lane.b32.xlu0 %v1415, 8
        %v1442 = vpop.permute.xlu0 %1441
        %1444 = vrot.lane.b32.xlu0 %v1418, 16
        %v1445 = vpop.permute.xlu0 %1444
        %v1447 = vsel %vm551, %v1439, %v1412
        %v1448 = vsel %vm1433, %v1447, %v1442
        %v1449 = vsel %vm1435, %v1448, %v1445
        %v1450 = vld [vmem:[%s3] sm:$0xff]
        %v1451 = vld [vmem:[%s3 + $0x8] sm:$0xff]
        %v1452 = vld [vmem:[%s3 + $0x10] sm:$0xff]
        %v1453 = vld [vmem:[%s3 + $0x18] sm:$0xff]
        %v1454 = vld [vmem:[%s4] sm:$0x1]
        %v1456 = vperm.slane %v1454, 0
        %v1459 = vsel %vm513, %v1436, 0
        %v1462 = vsel %vm513, %v1449, 0
        %1464 = vmatpush.msra.mxu0 0.0
        %1465 = vmatpush.msra.mxu0 0.0
        %1466 = vmatpush.msra.mxu0 0.0
        %1467 = vmatpush.msra.mxu0 0.0
        %1468 = vmatpush.msra.mxu0 0.0
        %1469 = vmatpush.msra.mxu0 0.0
        %1470 = vmatpush.msra.mxu0 0.0
        %1471 = vmatpush.msra.mxu0 0.0
        %1472 = vmatpush.msra.mxu0 0.0
        %1473 = vmatpush.msra.mxu0 0.0
        %1474 = vmatpush.msra.mxu0 0.0
        %1475 = vmatpush.msra.mxu0 0.0
        %1476 = vmatpush.msra.mxu0 %v1453
        %1477 = vmatpush.msra.mxu0 %v1452
        %1478 = vmatpush.msra.mxu0 %v1451
        %1479 = vmatpush.msra.mxu0 %v1450
        %1480 = vmatmul.f32.gmra.mxu0 %v1459
        %v1481 = vpop.f32.mrf.mxu0
        %v1482 = vadd.f32 %v1456, %v1481
        %1483 = vmatmul.f32.gmra.mxu0 %v1462
        %v1484 = vpop.f32.mrf.mxu0
        %v1485 = vadd.f32 %v1456, %v1484
        %1486 = vdwg.mxu0
        %v1487 = vadd.f32 %v503, %v1482
        %v1488 = vadd.f32 %v504, %v1485
        %v1489 = vld [vmem:[%s6] sm:$0x1]
        %v1490 = vld [vmem:[%s7] sm:$0x1]
        %v1491 = vsel %vm513, %v1487, 0.0
        %1492 = vadd.xlane.f32.xlu0 %v1491
        %v1493 = vpop.xlane.xlu0 %1492
        %v1494 = vsel %vm513, %v1488, 0.0
        %1495 = vadd.xlane.f32.xlu0 %v1494
        %v1496 = vpop.xlane.xlu0 %1495
        %v1497 = vrcp.pop 32.0
        %v1498 = vmul.f32 32.0, %v1497
        %v1499 = vsub.f32 1.0, %v1498
        %v1500 = vmul.f32 %v1497, %v1499
        %v1501 = vadd.f32 %v1497, %v1500
        %vm1502 = vweird.f32 %v1497
        %v1503 = vsel %vm1502, %v1497, %v1501
        %v1504 = vmul.f32 %v1493, %v1503
        %v1505 = vmul.f32 %v1496, %v1503
        %v1506 = vsub.f32 %v1487, %v1504
        %v1507 = vsub.f32 %v1488, %v1505
        %v1508 = vmul.f32 %v1506, %v1506
        %v1509 = vmul.f32 %v1507, %v1507
        %v1510 = vsel %vm513, %v1508, 0.0
        %1511 = vadd.xlane.f32.xlu0 %v1510
        %v1512 = vpop.xlane.xlu0 %1511
        %v1513 = vsel %vm513, %v1509, 0.0
        %1514 = vadd.xlane.f32.xlu0 %v1513
        %v1515 = vpop.xlane.xlu0 %1514
        %v1516 = vmul.f32 %v1512, %v1503
        %v1517 = vmul.f32 %v1515, %v1503
        %v1518 = vadd.f32 %v1516, 1e-05
        %v1519 = vadd.f32 %v1517, 1e-05
        %v1520 = vrsqrt.pop %v1518
        %v1521 = vmul.f32 %v1520, %v1518
        %v1522 = vmul.f32 %v1521, %v1520
        %v1523 = vmul.f32 0.5, %v1522
        %v1524 = vsub.f32 1.5, %v1523
        %v1525 = vmul.f32 %v1520, %v1524
        %vm1526 = vweird.f32 %v1518
        %vm1527 = vweird.f32 %v1520
        %vm1528 = vmor %vm1526, %vm1527
        %v1529 = vsel %vm1528, %v1520, %v1525
        %v1530 = vrsqrt.pop %v1519
        %v1531 = vmul.f32 %v1530, %v1519
        %v1532 = vmul.f32 %v1531, %v1530
        %v1533 = vmul.f32 0.5, %v1532
        %v1534 = vsub.f32 1.5, %v1533
        %v1535 = vmul.f32 %v1530, %v1534
        %vm1536 = vweird.f32 %v1519
        %vm1537 = vweird.f32 %v1530
        %vm1538 = vmor %vm1536, %vm1537
        %v1539 = vsel %vm1538, %v1530, %v1535
        %v1540 = vmul.f32 %v1506, %v1529
        %v1541 = vmul.f32 %v1507, %v1539
        %v1543 = vperm.slane %v1489, 0
        %v1545 = vmul.f32 %v1540, %v1543
        %v1546 = vmul.f32 %v1541, %v1543
        %v1548 = vperm.slane %v1490, 0
        %v1550 = vadd.f32 %v1545, %v1548
        %v1551 = vadd.f32 %v1546, %v1548
        %v1552 = vld [vmem:[#allocation5] sm:$0xff]
        %v1553 = vld [vmem:[#allocation5 + $0x8] sm:$0xff]
        %v1554 = vld [vmem:[#allocation5 + $0x10] sm:$0xff]
        %v1555 = vld [vmem:[#allocation5 + $0x18] sm:$0xff]
        %v1556 = vld [vmem:[%s9] sm:$0x1]
        %v1558 = vperm.slane %v1556, 0
        %v1561 = vsel %vm513, %v1550, 0
        %v1564 = vsel %vm513, %v1551, 0
        %1566 = vmatpush.msra.mxu0 0.0
        %1567 = vmatpush.msra.mxu0 0.0
        %1568 = vmatpush.msra.mxu0 0.0
        %1569 = vmatpush.msra.mxu0 0.0
        %1570 = vmatpush.msra.mxu0 0.0
        %1571 = vmatpush.msra.mxu0 0.0
        %1572 = vmatpush.msra.mxu0 0.0
        %1573 = vmatpush.msra.mxu0 0.0
        %1574 = vmatpush.msra.mxu0 0.0
        %1575 = vmatpush.msra.mxu0 0.0
        %1576 = vmatpush.msra.mxu0 0.0
        %1577 = vmatpush.msra.mxu0 0.0
        %1578 = vmatpush.msra.mxu0 %v1555
        %1579 = vmatpush.msra.mxu0 %v1554
        %1580 = vmatpush.msra.mxu0 %v1553
        %1581 = vmatpush.msra.mxu0 %v1552
        %1582 = vmatmul.f32.gmra.mxu0 %v1561
        %v1583 = vpop.f32.mrf.mxu0
        %v1584 = vadd.f32 %v1558, %v1583
        %1585 = vmatmul.f32.gmra.mxu0 %v1564
        %v1586 = vpop.f32.mrf.mxu0
        %v1587 = vadd.f32 %v1558, %v1586
        %1588 = vdwg.mxu0
        %v1589 = vmax.f32 %v1584, 0.0
        %v1590 = vmax.f32 %v1587, 0.0
        %v1591 = vld [vmem:[%s10] sm:$0xff]
        %v1592 = vld [vmem:[%s10 + $0x8] sm:$0xff]
        %v1593 = vld [vmem:[%s10 + $0x10] sm:$0xff]
        %v1594 = vld [vmem:[%s10 + $0x18] sm:$0xff]
        %v1595 = vld [vmem:[%s10 + $0x20] sm:$0xff]
        %v1596 = vld [vmem:[%s10 + $0x28] sm:$0xff]
        %v1597 = vld [vmem:[%s10 + $0x30] sm:$0xff]
        %v1598 = vld [vmem:[%s10 + $0x38] sm:$0xff]
        %v1599 = vld [vmem:[%s11] sm:$0x1]
        %v1601 = vperm.slane %v1599, 0
        %vm1603 = vcmask 523264
        %v1605 = vsel %vm1603, %v1589, 0
        %v1608 = vsel %vm1603, %v1590, 0
        %1610 = vmatpush.msra.mxu0 0.0
        %1611 = vmatpush.msra.mxu0 0.0
        %1612 = vmatpush.msra.mxu0 0.0
        %1613 = vmatpush.msra.mxu0 0.0
        %1614 = vmatpush.msra.mxu0 0.0
        %1615 = vmatpush.msra.mxu0 0.0
        %1616 = vmatpush.msra.mxu0 0.0
        %1617 = vmatpush.msra.mxu0 0.0
        %1618 = vmatpush.msra.mxu0 %v1598
        %1619 = vmatpush.msra.mxu0 %v1597
        %1620 = vmatpush.msra.mxu0 %v1596
        %1621 = vmatpush.msra.mxu0 %v1595
        %1622 = vmatpush.msra.mxu0 %v1594
        %1623 = vmatpush.msra.mxu0 %v1593
        %1624 = vmatpush.msra.mxu0 %v1592
        %1625 = vmatpush.msra.mxu0 %v1591
        %1626 = vmatmul.f32.gmra.mxu0 %v1605
        %v1627 = vpop.f32.mrf.mxu0
        %v1628 = vadd.f32 %v1601, %v1627
        %1629 = vmatmul.f32.gmra.mxu0 %v1608
        %v1630 = vpop.f32.mrf.mxu0
        %v1631 = vadd.f32 %v1601, %v1630
        %1632 = vdwg.mxu0
        %v1633 = vadd.f32 %v1550, %v1628
        %v1634 = vadd.f32 %v1551, %v1631
        %v1635 = vld [vmem:[%s12] sm:$0x1]
        %v1636 = vld [vmem:[%s13] sm:$0x1]
        %v1637 = vsel %vm513, %v1633, 0.0
        %1638 = vadd.xlane.f32.xlu0 %v1637
        %v1639 = vpop.xlane.xlu0 %1638
        %v1640 = vsel %vm513, %v1634, 0.0
        %1641 = vadd.xlane.f32.xlu0 %v1640
        %v1642 = vpop.xlane.xlu0 %1641
        %v1643 = vmul.f32 %v1639, %v1503
        %v1644 = vmul.f32 %v1642, %v1503
        %v1645 = vsub.f32 %v1633, %v1643
        %v1646 = vsub.f32 %v1634, %v1644
        %v1647 = vmul.f32 %v1645, %v1645
        %v1648 = vmul.f32 %v1646, %v1646
        %v1649 = vsel %vm513, %v1647, 0.0
        %1650 = vadd.xlane.f32.xlu0 %v1649
        %v1651 = vpop.xlane.xlu0 %1650
        %v1652 = vsel %vm513, %v1648, 0.0
        %1653 = vadd.xlane.f32.xlu0 %v1652
        %v1654 = vpop.xlane.xlu0 %1653
        %v1655 = vmul.f32 %v1651, %v1503
        %v1656 = vmul.f32 %v1654, %v1503
        %v1657 = vadd.f32 %v1655, 1e-05
        %v1658 = vadd.f32 %v1656, 1e-05
        %v1659 = vrsqrt.pop %v1657
        %v1660 = vmul.f32 %v1659, %v1657
        %v1661 = vmul.f32 %v1660, %v1659
        %v1662 = vmul.f32 0.5, %v1661
        %v1663 = vsub.f32 1.5, %v1662
        %v1664 = vmul.f32 %v1659, %v1663
        %vm1665 = vweird.f32 %v1657
        %vm1666 = vweird.f32 %v1659
        %vm1667 = vmor %vm1665, %vm1666
        %v1668 = vsel %vm1667, %v1659, %v1664
        %v1669 = vrsqrt.pop %v1658
        %v1670 = vmul.f32 %v1669, %v1658
        %v1671 = vmul.f32 %v1670, %v1669
        %v1672 = vmul.f32 0.5, %v1671
        %v1673 = vsub.f32 1.5, %v1672
        %v1674 = vmul.f32 %v1669, %v1673
        %vm1675 = vweird.f32 %v1658
        %vm1676 = vweird.f32 %v1669
        %vm1677 = vmor %vm1675, %vm1676
        %v1678 = vsel %vm1677, %v1669, %v1674
        %v1679 = vmul.f32 %v1645, %v1668
        %v1680 = vmul.f32 %v1646, %v1678
        %v1682 = vperm.slane %v1635, 0
        %v1684 = vmul.f32 %v1679, %v1682
        %v1685 = vmul.f32 %v1680, %v1682
        %v1687 = vperm.slane %v1636, 0
        %v1689 = vadd.f32 %v1684, %v1687
        %v1690 = vadd.f32 %v1685, %v1687
        %1691 = vst.msk [vmem:[%s495] sm:$0xff] %vm513, %v1689
        %1692 = vst.msk [vmem:[%s495 + $0x8] sm:$0xff] %vm513, %v1690
        %s1693 = sand.u32 %s337, 1
        %s1694 = scalar_lea.sflag [#allocation4], %s1693
        %s1695 = sand.u32 %s337, 1
        %s1696 = smul.addr %s1695, 16
        %s1697 = scalar_lea.vmem [#allocation7], %s1696
        // Predicated region
        $region85: #{tpu_custom_call.1} parent=75 // pred_check
          %p1698 = pneg %p347
        $region86: #{tpu_custom_call.1} parent=75 // pred_check_branch
          %1700 = sbr.rel (%p1698) target = $region88
        $region87: #{tpu_custom_call.1} parent=75 // pred_region
          %s1701 = smul.u32 2, %s30
          %1703 = vsyncadd %s1694, 0
          %s1704 = smul.addr %s1701, 8
          %s1705 = scalar_lea.hbm %s14, %s1704
          %s1706 = sshll.u32 %s1697, 4
          %s1707 = int_to_ptr.vmem [resolvable:$true] %s1706
          %s1708 = sshll.u32 %s1705, 4
          %s1709 = int_to_ptr.hbm [resolvable:$true] %s1708
          %1714 = dma.vmem_to_hbm [thread:$0]  %s1707, 256, %s1709, %s1694, 128, 128, 8
        $region88: #{tpu_custom_call.1} parent=75 // pred_fallthru
          _
      $region76: #{tpu_custom_call.1} parent=5 // pred_fallthru
        _
      %p1715 = scmp.le.s32.totalorder 2, %s25
      // Predicated region
      $region89: #{tpu_custom_call.1} parent=5 // pred_check
        %p1716 = pneg %p1715
      $region90: #{tpu_custom_call.1} parent=5 // pred_check_branch
        %1718 = sbr.rel (%p1716) target = $region92
      $region91: #{tpu_custom_call.1} parent=5 // pred_region
        %s1719 = ssub.s32 %s25, 2
        // Predicated region
        $region93: #{tpu_custom_call.1} parent=91 // pred_check
          %p1720 = pneg %p353
        $region94: #{tpu_custom_call.1} parent=91 // pred_check_branch
          %1722 = sbr.rel (%p1720) target = $region96
        $region95: #{tpu_custom_call.1} parent=91 // pred_region
          %s1723 = sand.u32 %s338, 1
          %s1724 = scalar_lea.sflag [#allocation4], %s1723
          %s1725 = sand.u32 %s338, 1
          %s1726 = smul.addr %s1725, 16
          %s1727 = scalar_lea.vmem [#allocation7], %s1726
          %1729 = dma.done %s1724, 256
        $region96: #{tpu_custom_call.1} parent=91 // pred_fallthru
          _
      $region92: #{tpu_custom_call.1} parent=5 // pred_fallthru
        _
    $region6: #{tpu_custom_call.1} parent=1 // loop_footer
      %s29 = sadd.s32 1, %s25
    $region7: #{tpu_custom_call.1} parent=1 // loop_footer_branch
      %24 = sbr.rel target = $region3
    $region8: #{tpu_custom_call.1} parent=1 // loop_exit
      _
    %1730 = vsyncpa [#allocation3], 1
    %s1731 = scalar_lea.sflag [#allocation3], 1
    %1732 = vsyncpa %s1731, 1
    %1733 = vsyncpa [#allocation6], 1
    %1734 = vsyncpa [#allocation4], 1
    %s1735 = scalar_lea.sflag [#allocation4], 1
    %1736 = vsyncpa %s1735, 1

</llo_original>
